<compile_context>
chip_gen: v6e
topology: v6e:2x2x1
jax: 0.10.0
libtpu: 0.0.40
codegen_flags: <defaults>
</compile_context>

<pallas_src>
import numpy as np
import jax
import jax.numpy as jnp
from jax.experimental import pallas as pl
from jax.experimental.pallas import tpu as pltpu

NEG_SLOPE = 0.01        # nn.LeakyReLU default
BN_EPS = 1e-5           # nn.BatchNorm1d default
LOGIT_SCALE = 1.5
OT_BETA = 0.5
OT_ITERS = 50
OT_K = 1


def _leaky(x):
    return jnp.where(x > 0, x, NEG_SLOPE * x)


def _model_kernel(
    xe_ref, labels_ref,
    w1_ref, b1_ref, w2_ref, b2_ref,
    wd1_ref, bd1_ref, wd2_ref, bd2_ref,
    wc1_ref, bc1_ref, bng_ref, bnb_ref, bnm_ref, bnv_ref, wc2_ref, bc2_ref,
    zri_ref, zlab_ref, recon_ref, logits_ref, ot_ref, closs_ref,
):
    B = labels_ref.shape[1]
    Db = zlab_ref.shape[1]
    num_classes = logits_ref.shape[1]

    # ---- encoders: fused first layer on [x ; label_embed] -------------------
    xe = xe_ref[...]                                             # (2B, Din)
    h = jnp.dot(xe, w1_ref[...], preferred_element_type=jnp.float32) + b1_ref[...]
    h = _leaky(h)                                                # (2B, 2H)
    # fused second layer (block-diagonal weight) -> columns [enc_r | enc_i]
    z2 = jnp.dot(h, w2_ref[...], preferred_element_type=jnp.float32) + b2_ref[...]

    z_rz_i = z2[:B, :]                      # x rows: [z_r | z_i]     (B, 2Db)
    z_r = z2[:B, :Db]
    z_i = z2[:B, Db:]
    z_label = z2[B:, :Db]                   # label_embed rows through enc_r
    zri_ref[...] = z_rz_i
    zlab_ref[...] = z_label

    # ---- decoder (Dropout = identity in eval) --------------------------------
    hd = jnp.dot(z_rz_i, wd1_ref[...], preferred_element_type=jnp.float32) + bd1_ref[...]
    hd = _leaky(hd)
    recon_ref[...] = jnp.dot(hd, wd2_ref[...],
                             preferred_element_type=jnp.float32) + bd2_ref[...]

    # ---- classifier (BatchNorm1d eval mode, Dropout = identity) --------------
    hc = jnp.dot(z_r, wc1_ref[...], preferred_element_type=jnp.float32) + bc1_ref[...]
    hc = (hc - bnm_ref[...]) * jax.lax.rsqrt(bnv_ref[...] + BN_EPS) * bng_ref[...] + bnb_ref[...]
    hc = _leaky(hc)
    logits_ref[...] = jnp.dot(hc, wc2_ref[...],
                              preferred_element_type=jnp.float32) + bc2_ref[...]

    # ---- optimal transport distance (cosine cost, per-sample 1x1 IPOT) -------
    def _norm(v):
        return jnp.sqrt(jnp.sum(v * v, axis=-1, keepdims=True))

    n_lab, n_r, n_i = _norm(z_label), _norm(z_r), _norm(z_i)

    lab5 = z_label / jnp.maximum(n_lab, 1e-5)            # F.normalize eps=1e-5
    r5 = z_r / jnp.maximum(n_r, 1e-5)
    cost = 1.0 - jnp.sum(lab5 * r5, axis=-1, keepdims=True)        # (B, 1)
    A = jnp.exp(-cost / OT_BETA)

    def ipot_body(_, carry):
        T, sigma = carry
        Q = A * T
        # k (= OT_K) inner Sinkhorn steps
        for _ in range(OT_K):
            delta = pl.reciprocal(Q * sigma, approx=False)
            sigma = pl.reciprocal(delta * Q, approx=False)
        T = delta * Q * sigma
        return (T, sigma)

    T_fin, _ = jax.lax.fori_loop(
        0, OT_ITERS, ipot_body, (jnp.ones_like(cost), jnp.ones_like(cost)))
    ot_ref[...] = jnp.sum(cost * T_fin, axis=0, keepdims=True) * (1.0 / B)

    # ---- contrastive loss per unique label ------------------------------------
    # KLDivLoss('batchmean') with the one-hot target == group-mean of
    # -log_softmax[positive]; aggregated over present classes via one-hot.
    lab12 = z_label / jnp.maximum(n_lab, 1e-12)          # F.normalize eps=1e-12
    r12 = z_r / jnp.maximum(n_r, 1e-12)
    i12 = z_i / jnp.maximum(n_i, 1e-12)

    def _cos(a, b):                                      # F.cosine_similarity (eps=1e-8)
        return (jnp.sum(a * b, axis=-1, keepdims=True)
                / jnp.maximum(_norm(a) * _norm(b), 1e-8))

    s_pos = LOGIT_SCALE * _cos(lab12, r12)
    s_neg = LOGIT_SCALE * _cos(lab12, i12)
    m = jnp.maximum(s_pos, s_neg)
    lse = m + jnp.log(jnp.exp(s_pos - m) + jnp.exp(s_neg - m))
    val = lse - s_pos                                    # (B, 1) = -log_softmax[pos]

    labels = labels_ref[...]                             # (1, B) int32
    cls_iota = jax.lax.broadcasted_iota(jnp.int32, (num_classes, B), 0)
    onehot = (cls_iota == labels).astype(jnp.float32)    # (C, B)
    counts = jnp.sum(onehot, axis=1, keepdims=True)      # (C, 1)
    sums = jnp.dot(onehot, val, preferred_element_type=jnp.float32)
    present = (counts > 0.0).astype(jnp.float32)
    per_class = sums / jnp.maximum(counts, 1.0)
    closs_ref[...] = (jnp.sum(per_class * present, axis=0, keepdims=True)
                      / jnp.sum(present, axis=0, keepdims=True))


def _full_spec(shape):
    nd = len(shape)
    return pl.BlockSpec(shape, lambda i, _nd=nd: (0,) * _nd)


@jax.jit
def model_forward(x, labels, params):
    B, Din = x.shape
    H = params["enc_r_w1"].shape[0]
    Db = params["enc_r_w2"].shape[0]
    num_classes = params["cls_w2"].shape[0]

    # ---- one-time weight prep (pre-transposed / fused; outside the kernel) ----
    w1 = jnp.concatenate([params["enc_r_w1"].T, params["enc_i_w1"].T], axis=1)   # (Din, 2H)
    b1 = jnp.concatenate([params["enc_r_b1"], params["enc_i_b1"]])[None, :]
    w2 = jnp.zeros((2 * H, 2 * Db), jnp.float32)
    w2 = w2.at[:H, :Db].set(params["enc_r_w2"].T)
    w2 = w2.at[H:, Db:].set(params["enc_i_w2"].T)                                # block-diag
    b2 = jnp.concatenate([params["enc_r_b2"], params["enc_i_b2"]])[None, :]

    wd1, bd1 = params["dec_w1"].T, params["dec_b1"][None, :]
    wd2, bd2 = params["dec_w2"].T, params["dec_b2"][None, :]
    wc1, bc1 = params["cls_w1"].T, params["cls_b1"][None, :]
    wc2, bc2 = params["cls_w2"].T, params["cls_b2"][None, :]
    bng, bnb = params["bn_gamma"][None, :], params["bn_beta"][None, :]
    bnm, bnv = params["bn_mean"][None, :], params["bn_var"][None, :]

    label_embed = jnp.take(params["embedding"], labels, axis=0)                  # (B, Din)
    xe = jnp.concatenate([x, label_embed], axis=0)                               # (2B, Din)
    labels2d = labels.astype(jnp.int32)[None, :]                                 # (1, B)

    ins = [xe, labels2d, w1, b1, w2, b2, wd1, bd1, wd2, bd2,
           wc1, bc1, bng, bnb, bnm, bnv, wc2, bc2]

    out_shape = (
        jax.ShapeDtypeStruct((B, 2 * Db), jnp.float32),       # [z_r | z_i]
        jax.ShapeDtypeStruct((B, Db), jnp.float32),           # z_label
        jax.ShapeDtypeStruct((B, Din), jnp.float32),          # per-row decoder output
        jax.ShapeDtypeStruct((B, num_classes), jnp.float32),  # classifier logits
        jax.ShapeDtypeStruct((1, 1), jnp.float32),            # ot distance
        jax.ShapeDtypeStruct((1, 1), jnp.float32),            # contrastive loss
    )

    z_rz_i, z_label, recon, logits, ot, closs = pl.pallas_call(
        _model_kernel,
        out_shape=out_shape,
        grid_spec=pltpu.PrefetchScalarGridSpec(
            num_scalar_prefetch=0,
            grid=(1,),
            in_specs=[_full_spec(a.shape) for a in ins],
            out_specs=tuple(_full_spec(s.shape) for s in out_shape),
        ),
        compiler_params=pltpu.CompilerParams(
            dimension_semantics=("arbitrary",)),
    )(*ins)

    z_r = z_rz_i[:, :Db]
    z_i = z_rz_i[:, Db:]

    # Data-dependent regrouping by label (torch: per-unique-label gather + cat);
    # a stable sort by label reproduces that concatenation order exactly.
    order = jnp.argsort(labels, stable=True)
    x_recon = recon[order]
    x_ori = x[order]
    return (x_recon, z_label, z_r, z_i, ot[0, 0], x_ori, closs[0, 0], logits)


# ----------------------------- NumPy reference --------------------------------
def _np_leaky(x):
    return np.where(x > 0, x, NEG_SLOPE * x).astype(np.float32)


def _np_lin(x, w, b):
    return (x @ w.T + b).astype(np.float32)


def _np_norm(x, eps):
    n = np.sqrt((x * x).sum(-1, keepdims=True))
    return x / np.maximum(n, eps)


def _reference(x, labels, p):
    """Pure-NumPy transcription of the PyTorch forward (eval mode; identity
    within-group permutation in place of torch.randperm)."""
    x = np.asarray(x, np.float32)
    labels = np.asarray(labels)

    def enc(inp, which):
        h = _np_leaky(_np_lin(inp, p[f"enc_{which}_w1"], p[f"enc_{which}_b1"]))
        return _np_lin(h, p[f"enc_{which}_w2"], p[f"enc_{which}_b2"])

    z_r = enc(x, "r")
    z_i = enc(x, "i")
    label_embed = p["embedding"][labels]
    z_label = enc(label_embed, "r")

    # optimal transport distance
    xn = _np_norm(z_label, 1e-5)
    yn = _np_norm(z_r, 1e-5)
    cost = (1.0 - (xn * yn).sum(-1, keepdims=True))[..., None]        # (B,1,1)
    b, m, n = cost.shape
    sigma = np.ones((b, m), np.float32)
    T = np.ones((b, n, m), np.float32)
    A = np.exp(-np.transpose(cost, (0, 2, 1)) / OT_BETA)
    for _ in range(OT_ITERS):
        Q = A * T
        sigma = sigma.reshape(b, m, 1)
        for _ in range(OT_K):
            delta = 1.0 / (Q @ sigma).reshape(b, 1, n)
            sigma = 1.0 / (delta @ Q)
        T = delta.reshape(b, n, 1) * Q * sigma
    ot = float(np.matmul(cost, T).reshape(b).mean())

    # contrastive loss per unique label
    uniq = np.unique(labels)
    total = 0.0
    for lab in uniq:
        idx = np.nonzero(labels == lab)[0]
        zl, zr, zi = z_label[idx], z_r[idx], z_i[idx]
        samples = _np_norm(np.stack([zr, zi], axis=1), 1e-12)         # (bz,2,D)
        zl_n = _np_norm(zl, 1e-12)
        num = (zl_n[:, None, :] * samples).sum(-1)                    # (bz,2)
        den = np.maximum(np.sqrt((zl_n * zl_n).sum(-1))[:, None]
                         * np.sqrt((samples * samples).sum(-1)), 1e-8)
        lg = LOGIT_SCALE * num / den
        mx = lg.max(axis=1, keepdims=True)
        lg_ls = lg - (mx + np.log(np.exp(lg - mx).sum(axis=1, keepdims=True)))
        bz = len(idx)
        target = np.concatenate([np.ones((bz, 1)), np.zeros((bz, 1))], axis=1)
        # KLDiv pointwise: target * (log target - input), zero where target == 0
        pointwise = np.where(target > 0,
                             target * (np.log(np.maximum(target, 1e-30)) - lg_ls), 0.0)
        total += pointwise.sum() / bz
    closs = float(total / len(uniq))

    # reconstruction / x_ori (identity within-group permutation)
    xr_list, xo_list = [], []
    for lab in uniq:
        idx = np.nonzero(labels == lab)[0]
        zcat = np.concatenate([z_r[idx], z_i[idx]], axis=1)
        hd = _np_leaky(_np_lin(zcat, p["dec_w1"], p["dec_b1"]))
        xr_list.append(_np_lin(hd, p["dec_w2"], p["dec_b2"]))
        xo_list.append(x[idx])
    x_recon = np.concatenate(xr_list, axis=0)
    x_ori = np.concatenate(xo_list, axis=0)

    # classifier (eval-mode BatchNorm, Dropout identity)
    hc = _np_lin(z_r, p["cls_w1"], p["cls_b1"])
    hc = (hc - p["bn_mean"]) / np.sqrt(p["bn_var"] + BN_EPS) * p["bn_gamma"] + p["bn_beta"]
    hc = _np_leaky(hc)
    logits = _np_lin(hc, p["cls_w2"], p["cls_b2"])

    return x_recon, z_label, z_r, z_i, ot, x_ori, closs, logits


if __name__ == "__main__":
    B, Din, H, Db, NCLS = 16, 32, 64, 16, 8

    key = jax.random.PRNGKey(0)
    ks = iter(jax.random.split(key, 32))

    def lin_w(kk, out_d, in_d):
        s = 1.0 / np.sqrt(in_d)
        return jax.random.uniform(kk, (out_d, in_d), jnp.float32, -s, s)

    def lin_b(kk, out_d, in_d):
        s = 1.0 / np.sqrt(in_d)
        return jax.random.uniform(kk, (out_d,), jnp.float32, -s, s)

    params = {
        "enc_r_w1": lin_w(next(ks), H, Din), "enc_r_b1": lin_b(next(ks), H, Din),
        "enc_r_w2": lin_w(next(ks), Db, H),  "enc_r_b2": lin_b(next(ks), Db, H),
        "enc_i_w1": lin_w(next(ks), H, Din), "enc_i_b1": lin_b(next(ks), H, Din),
        "enc_i_w2": lin_w(next(ks), Db, H),  "enc_i_b2": lin_b(next(ks), Db, H),
        "embedding": jax.random.normal(next(ks), (NCLS, Din), jnp.float32),
        "dec_w1": lin_w(next(ks), H, 2 * Db), "dec_b1": lin_b(next(ks), H, 2 * Db),
        "dec_w2": lin_w(next(ks), Din, H),    "dec_b2": lin_b(next(ks), Din, H),
        "cls_w1": lin_w(next(ks), H, Db),     "cls_b1": lin_b(next(ks), H, Db),
        "bn_gamma": jax.random.uniform(next(ks), (H,), jnp.float32, 0.8, 1.2),
        "bn_beta": 0.1 * jax.random.normal(next(ks), (H,), jnp.float32),
        "bn_mean": 0.1 * jax.random.normal(next(ks), (H,), jnp.float32),
        "bn_var": jax.random.uniform(next(ks), (H,), jnp.float32, 0.5, 1.5),
        "cls_w2": lin_w(next(ks), NCLS, H),   "cls_b2": lin_b(next(ks), NCLS, H),
    }

    x = jax.random.normal(next(ks), (B, Din), jnp.float32)
    labels = jax.random.randint(next(ks), (B,), 0, NCLS, jnp.int32)

    outs = model_forward(x, labels, params)
    outs = jax.block_until_ready(outs)

    refs = _reference(np.asarray(x), np.asarray(labels),
                      {k: np.asarray(v) for k, v in params.items()})

    max_err = 0.0
    for o, r in zip(outs, refs):
        err = float(np.max(np.abs(np.asarray(o, np.float64) - np.asarray(r, np.float64))))
        max_err = max(max_err, err)
    assert max_err < 1e-3, f"mismatch vs reference: {max_err}"
    print("KERNEL_OK")
</pallas_src>

<mosaic_0001>
module attributes {stable_mosaic.version = 11 : i64} {
  func.func @_model_kernel(%arg0: i32, %arg1: memref<32x32xf32, #tpu.memory_space<vmem>>, %arg2: memref<1x16xi32, #tpu.memory_space<vmem>>, %arg3: memref<32x128xf32, #tpu.memory_space<vmem>>, %arg4: memref<1x128xf32, #tpu.memory_space<vmem>>, %arg5: memref<128x32xf32, #tpu.memory_space<vmem>>, %arg6: memref<1x32xf32, #tpu.memory_space<vmem>>, %arg7: memref<32x64xf32, #tpu.memory_space<vmem>>, %arg8: memref<1x64xf32, #tpu.memory_space<vmem>>, %arg9: memref<64x32xf32, #tpu.memory_space<vmem>>, %arg10: memref<1x32xf32, #tpu.memory_space<vmem>>, %arg11: memref<16x64xf32, #tpu.memory_space<vmem>>, %arg12: memref<1x64xf32, #tpu.memory_space<vmem>>, %arg13: memref<1x64xf32, #tpu.memory_space<vmem>>, %arg14: memref<1x64xf32, #tpu.memory_space<vmem>>, %arg15: memref<1x64xf32, #tpu.memory_space<vmem>>, %arg16: memref<1x64xf32, #tpu.memory_space<vmem>>, %arg17: memref<64x8xf32, #tpu.memory_space<vmem>>, %arg18: memref<1x8xf32, #tpu.memory_space<vmem>>, %arg19: memref<16x32xf32, #tpu.memory_space<vmem>>, %arg20: memref<16x16xf32, #tpu.memory_space<vmem>>, %arg21: memref<16x32xf32, #tpu.memory_space<vmem>>, %arg22: memref<16x8xf32, #tpu.memory_space<vmem>>, %arg23: memref<1x1xf32, #tpu.memory_space<vmem>>, %arg24: memref<1x1xf32, #tpu.memory_space<vmem>>) attributes {dimension_semantics = [#tpu.dimension_semantics<arbitrary>], iteration_bounds = array<i64: 1>, scalar_prefetch = 0 : i64, scratch_operands = 0 : i64, tpu.core_type = #tpu.core_type<tc>, window_params = [{pipeline_mode = #tpu.pipeline_mode<synchronous>, transform_indices = @transform_0, window_bounds = array<i64: 32, 32>}, {pipeline_mode = #tpu.pipeline_mode<synchronous>, transform_indices = @transform_1, window_bounds = array<i64: 1, 16>}, {pipeline_mode = #tpu.pipeline_mode<synchronous>, transform_indices = @transform_2, window_bounds = array<i64: 32, 128>}, {pipeline_mode = #tpu.pipeline_mode<synchronous>, transform_indices = @transform_3, window_bounds = array<i64: 1, 128>}, {pipeline_mode = #tpu.pipeline_mode<synchronous>, transform_indices = @transform_4, window_bounds = array<i64: 128, 32>}, {pipeline_mode = #tpu.pipeline_mode<synchronous>, transform_indices = @transform_5, window_bounds = array<i64: 1, 32>}, {pipeline_mode = #tpu.pipeline_mode<synchronous>, transform_indices = @transform_6, window_bounds = array<i64: 32, 64>}, {pipeline_mode = #tpu.pipeline_mode<synchronous>, transform_indices = @transform_7, window_bounds = array<i64: 1, 64>}, {pipeline_mode = #tpu.pipeline_mode<synchronous>, transform_indices = @transform_8, window_bounds = array<i64: 64, 32>}, {pipeline_mode = #tpu.pipeline_mode<synchronous>, transform_indices = @transform_9, window_bounds = array<i64: 1, 32>}, {pipeline_mode = #tpu.pipeline_mode<synchronous>, transform_indices = @transform_10, window_bounds = array<i64: 16, 64>}, {pipeline_mode = #tpu.pipeline_mode<synchronous>, transform_indices = @transform_11, window_bounds = array<i64: 1, 64>}, {pipeline_mode = #tpu.pipeline_mode<synchronous>, transform_indices = @transform_12, window_bounds = array<i64: 1, 64>}, {pipeline_mode = #tpu.pipeline_mode<synchronous>, transform_indices = @transform_13, window_bounds = array<i64: 1, 64>}, {pipeline_mode = #tpu.pipeline_mode<synchronous>, transform_indices = @transform_14, window_bounds = array<i64: 1, 64>}, {pipeline_mode = #tpu.pipeline_mode<synchronous>, transform_indices = @transform_15, window_bounds = array<i64: 1, 64>}, {pipeline_mode = #tpu.pipeline_mode<synchronous>, transform_indices = @transform_16, window_bounds = array<i64: 64, 8>}, {pipeline_mode = #tpu.pipeline_mode<synchronous>, transform_indices = @transform_17, window_bounds = array<i64: 1, 8>}, {pipeline_mode = #tpu.pipeline_mode<synchronous>, transform_indices = @transform_18, window_bounds = array<i64: 16, 32>}, {pipeline_mode = #tpu.pipeline_mode<synchronous>, transform_indices = @transform_19, window_bounds = array<i64: 16, 16>}, {pipeline_mode = #tpu.pipeline_mode<synchronous>, transform_indices = @transform_20, window_bounds = array<i64: 16, 32>}, {pipeline_mode = #tpu.pipeline_mode<synchronous>, transform_indices = @transform_21, window_bounds = array<i64: 16, 8>}, {pipeline_mode = #tpu.pipeline_mode<synchronous>, transform_indices = @transform_22, window_bounds = array<i64: 1, 1>}, {pipeline_mode = #tpu.pipeline_mode<synchronous>, transform_indices = @transform_23, window_bounds = array<i64: 1, 1>}]} {
    %c0 = arith.constant 0 : index
    %c0_0 = arith.constant 0 : index
    %0 = vector.load %arg1[%c0, %c0_0] : memref<32x32xf32, #tpu.memory_space<vmem>>, vector<32x32xf32>
    %c0_1 = arith.constant 0 : index
    %c0_2 = arith.constant 0 : index
    %1 = vector.load %arg3[%c0_1, %c0_2] : memref<32x128xf32, #tpu.memory_space<vmem>>, vector<32x128xf32>
    %cst = arith.constant dense<0.000000e+00> : vector<32x128xf32>
    %2 = tpu.matmul %0, %1, %cst {dimension_numbers = #tpu.dot_dimension_numbers<[1], [0], [0], [1], [0, 0, 1, 1], [], []>} : vector<32x32xf32>, vector<32x128xf32>, vector<32x128xf32> -> vector<32x128xf32>
    %c0_3 = arith.constant 0 : index
    %c0_4 = arith.constant 0 : index
    %3 = vector.load %arg4[%c0_3, %c0_4] : memref<1x128xf32, #tpu.memory_space<vmem>>, vector<1x128xf32>
    %4 = vector.broadcast %3 : vector<1x128xf32> to vector<32x128xf32>
    %5 = arith.addf %2, %4 : vector<32x128xf32>
    %cst_5 = arith.constant 0.000000e+00 : f32
    %6 = vector.broadcast %cst_5 : f32 to vector<32x128xf32>
    %7 = arith.cmpf ogt, %5, %6 : vector<32x128xf32>
    %cst_6 = arith.constant 0.00999999977 : f32
    %8 = vector.broadcast %cst_6 : f32 to vector<32x128xf32>
    %9 = arith.mulf %8, %5 : vector<32x128xf32>
    %10 = arith.select %7, %5, %9 : vector<32x128xi1>, vector<32x128xf32>
    %c0_7 = arith.constant 0 : index
    %c0_8 = arith.constant 0 : index
    %11 = vector.load %arg5[%c0_7, %c0_8] : memref<128x32xf32, #tpu.memory_space<vmem>>, vector<128x32xf32>
    %cst_9 = arith.constant dense<0.000000e+00> : vector<32x32xf32>
    %12 = tpu.matmul %10, %11, %cst_9 {dimension_numbers = #tpu.dot_dimension_numbers<[1], [0], [0], [1], [0, 0, 1, 1], [], []>} : vector<32x128xf32>, vector<128x32xf32>, vector<32x32xf32> -> vector<32x32xf32>
    %c0_10 = arith.constant 0 : index
    %c0_11 = arith.constant 0 : index
    %13 = vector.load %arg6[%c0_10, %c0_11] : memref<1x32xf32, #tpu.memory_space<vmem>>, vector<1x32xf32>
    %14 = vector.broadcast %13 : vector<1x32xf32> to vector<32x32xf32>
    %15 = arith.addf %12, %14 : vector<32x32xf32>
    %16 = vector.extract_strided_slice %15 {offsets = [0, 0], sizes = [16, 32], strides = [1, 1]} : vector<32x32xf32> to vector<16x32xf32>
    %17 = vector.extract_strided_slice %15 {offsets = [0, 0], sizes = [16, 16], strides = [1, 1]} : vector<32x32xf32> to vector<16x16xf32>
    %18 = vector.extract_strided_slice %15 {offsets = [0, 16], sizes = [16, 16], strides = [1, 1]} : vector<32x32xf32> to vector<16x16xf32>
    %19 = vector.extract_strided_slice %15 {offsets = [16, 0], sizes = [16, 16], strides = [1, 1]} : vector<32x32xf32> to vector<16x16xf32>
    %c0_12 = arith.constant 0 : index
    %c0_13 = arith.constant 0 : index
    %20 = vector.load %arg19[%c0_12, %c0_13] : memref<16x32xf32, #tpu.memory_space<vmem>>, vector<16x32xf32>
    tpu.vector_store %arg19[%c0_12, %c0_13], %16 {strides = array<i32>} : memref<16x32xf32, #tpu.memory_space<vmem>>, vector<16x32xf32>,
    %c0_14 = arith.constant 0 : index
    %c0_15 = arith.constant 0 : index
    %21 = vector.load %arg20[%c0_14, %c0_15] : memref<16x16xf32, #tpu.memory_space<vmem>>, vector<16x16xf32>
    tpu.vector_store %arg20[%c0_14, %c0_15], %19 {strides = array<i32>} : memref<16x16xf32, #tpu.memory_space<vmem>>, vector<16x16xf32>,
    %c0_16 = arith.constant 0 : index
    %c0_17 = arith.constant 0 : index
    %22 = vector.load %arg7[%c0_16, %c0_17] : memref<32x64xf32, #tpu.memory_space<vmem>>, vector<32x64xf32>
    %cst_18 = arith.constant dense<0.000000e+00> : vector<16x64xf32>
    %23 = tpu.matmul %16, %22, %cst_18 {dimension_numbers = #tpu.dot_dimension_numbers<[1], [0], [0], [1], [0, 0, 1, 1], [], []>} : vector<16x32xf32>, vector<32x64xf32>, vector<16x64xf32> -> vector<16x64xf32>
    %c0_19 = arith.constant 0 : index
    %c0_20 = arith.constant 0 : index
    %24 = vector.load %arg8[%c0_19, %c0_20] : memref<1x64xf32, #tpu.memory_space<vmem>>, vector<1x64xf32>
    %25 = vector.broadcast %24 : vector<1x64xf32> to vector<16x64xf32>
    %26 = arith.addf %23, %25 : vector<16x64xf32>
    %cst_21 = arith.constant 0.000000e+00 : f32
    %27 = vector.broadcast %cst_21 : f32 to vector<16x64xf32>
    %28 = arith.cmpf ogt, %26, %27 : vector<16x64xf32>
    %cst_22 = arith.constant 0.00999999977 : f32
    %29 = vector.broadcast %cst_22 : f32 to vector<16x64xf32>
    %30 = arith.mulf %29, %26 : vector<16x64xf32>
    %31 = arith.select %28, %26, %30 : vector<16x64xi1>, vector<16x64xf32>
    %c0_23 = arith.constant 0 : index
    %c0_24 = arith.constant 0 : index
    %32 = vector.load %arg9[%c0_23, %c0_24] : memref<64x32xf32, #tpu.memory_space<vmem>>, vector<64x32xf32>
    %cst_25 = arith.constant dense<0.000000e+00> : vector<16x32xf32>
    %33 = tpu.matmul %31, %32, %cst_25 {dimension_numbers = #tpu.dot_dimension_numbers<[1], [0], [0], [1], [0, 0, 1, 1], [], []>} : vector<16x64xf32>, vector<64x32xf32>, vector<16x32xf32> -> vector<16x32xf32>
    %c0_26 = arith.constant 0 : index
    %c0_27 = arith.constant 0 : index
    %34 = vector.load %arg10[%c0_26, %c0_27] : memref<1x32xf32, #tpu.memory_space<vmem>>, vector<1x32xf32>
    %35 = vector.broadcast %34 : vector<1x32xf32> to vector<16x32xf32>
    %36 = arith.addf %33, %35 : vector<16x32xf32>
    %c0_28 = arith.constant 0 : index
    %c0_29 = arith.constant 0 : index
    %37 = vector.load %arg21[%c0_28, %c0_29] : memref<16x32xf32, #tpu.memory_space<vmem>>, vector<16x32xf32>
    tpu.vector_store %arg21[%c0_28, %c0_29], %36 {strides = array<i32>} : memref<16x32xf32, #tpu.memory_space<vmem>>, vector<16x32xf32>,
    %c0_30 = arith.constant 0 : index
    %c0_31 = arith.constant 0 : index
    %38 = vector.load %arg11[%c0_30, %c0_31] : memref<16x64xf32, #tpu.memory_space<vmem>>, vector<16x64xf32>
    %cst_32 = arith.constant dense<0.000000e+00> : vector<16x64xf32>
    %39 = tpu.matmul %17, %38, %cst_32 {dimension_numbers = #tpu.dot_dimension_numbers<[1], [0], [0], [1], [0, 0, 1, 1], [], []>} : vector<16x16xf32>, vector<16x64xf32>, vector<16x64xf32> -> vector<16x64xf32>
    %c0_33 = arith.constant 0 : index
    %c0_34 = arith.constant 0 : index
    %40 = vector.load %arg12[%c0_33, %c0_34] : memref<1x64xf32, #tpu.memory_space<vmem>>, vector<1x64xf32>
    %41 = vector.broadcast %40 : vector<1x64xf32> to vector<16x64xf32>
    %42 = arith.addf %39, %41 : vector<16x64xf32>
    %c0_35 = arith.constant 0 : index
    %c0_36 = arith.constant 0 : index
    %43 = vector.load %arg15[%c0_35, %c0_36] : memref<1x64xf32, #tpu.memory_space<vmem>>, vector<1x64xf32>
    %44 = vector.broadcast %43 : vector<1x64xf32> to vector<16x64xf32>
    %45 = arith.subf %42, %44 : vector<16x64xf32>
    %c0_37 = arith.constant 0 : index
    %c0_38 = arith.constant 0 : index
    %46 = vector.load %arg16[%c0_37, %c0_38] : memref<1x64xf32, #tpu.memory_space<vmem>>, vector<1x64xf32>
    %cst_39 = arith.constant 9.99999974E-6 : f32
    %47 = vector.broadcast %cst_39 : f32 to vector<1x64xf32>
    %48 = arith.addf %46, %47 : vector<1x64xf32>
    %49 = math.rsqrt %48 : vector<1x64xf32>
    %50 = vector.broadcast %49 : vector<1x64xf32> to vector<16x64xf32>
    %51 = arith.mulf %45, %50 : vector<16x64xf32>
    %c0_40 = arith.constant 0 : index
    %c0_41 = arith.constant 0 : index
    %52 = vector.load %arg13[%c0_40, %c0_41] : memref<1x64xf32, #tpu.memory_space<vmem>>, vector<1x64xf32>
    %53 = vector.broadcast %52 : vector<1x64xf32> to vector<16x64xf32>
    %54 = arith.mulf %51, %53 : vector<16x64xf32>
    %c0_42 = arith.constant 0 : index
    %c0_43 = arith.constant 0 : index
    %55 = vector.load %arg14[%c0_42, %c0_43] : memref<1x64xf32, #tpu.memory_space<vmem>>, vector<1x64xf32>
    %56 = vector.broadcast %55 : vector<1x64xf32> to vector<16x64xf32>
    %57 = arith.addf %54, %56 : vector<16x64xf32>
    %cst_44 = arith.constant 0.000000e+00 : f32
    %58 = vector.broadcast %cst_44 : f32 to vector<16x64xf32>
    %59 = arith.cmpf ogt, %57, %58 : vector<16x64xf32>
    %cst_45 = arith.constant 0.00999999977 : f32
    %60 = vector.broadcast %cst_45 : f32 to vector<16x64xf32>
    %61 = arith.mulf %60, %57 : vector<16x64xf32>
    %62 = arith.select %59, %57, %61 : vector<16x64xi1>, vector<16x64xf32>
    %c0_46 = arith.constant 0 : index
    %c0_47 = arith.constant 0 : index
    %63 = vector.load %arg17[%c0_46, %c0_47] : memref<64x8xf32, #tpu.memory_space<vmem>>, vector<64x8xf32>
    %cst_48 = arith.constant dense<0.000000e+00> : vector<16x8xf32>
    %64 = tpu.matmul %62, %63, %cst_48 {dimension_numbers = #tpu.dot_dimension_numbers<[1], [0], [0], [1], [0, 0, 1, 1], [], []>} : vector<16x64xf32>, vector<64x8xf32>, vector<16x8xf32> -> vector<16x8xf32>
    %c0_49 = arith.constant 0 : index
    %c0_50 = arith.constant 0 : index
    %65 = vector.load %arg18[%c0_49, %c0_50] : memref<1x8xf32, #tpu.memory_space<vmem>>, vector<1x8xf32>
    %66 = vector.broadcast %65 : vector<1x8xf32> to vector<16x8xf32>
    %67 = arith.addf %64, %66 : vector<16x8xf32>
    %c0_51 = arith.constant 0 : index
    %c0_52 = arith.constant 0 : index
    %68 = vector.load %arg22[%c0_51, %c0_52] : memref<16x8xf32, #tpu.memory_space<vmem>>, vector<16x8xf32>
    tpu.vector_store %arg22[%c0_51, %c0_52], %67 {strides = array<i32>} : memref<16x8xf32, #tpu.memory_space<vmem>>, vector<16x8xf32>,
    %69 = arith.mulf %19, %19 : vector<16x16xf32>
    %cst_53 = arith.constant dense<0.000000e+00> : vector<16xf32>
    %70 = vector.multi_reduction <add>, %69, %cst_53 [1] : vector<16x16xf32> to vector<16xf32>
    %71 = vector.shape_cast %70 : vector<16xf32> to vector<16x1xf32>
    %72 = math.sqrt %71 : vector<16x1xf32>
    %73 = arith.mulf %17, %17 : vector<16x16xf32>
    %cst_54 = arith.constant dense<0.000000e+00> : vector<16xf32>
    %74 = vector.multi_reduction <add>, %73, %cst_54 [1] : vector<16x16xf32> to vector<16xf32>
    %75 = vector.shape_cast %74 : vector<16xf32> to vector<16x1xf32>
    %76 = math.sqrt %75 : vector<16x1xf32>
    %77 = arith.mulf %18, %18 : vector<16x16xf32>
    %cst_55 = arith.constant dense<0.000000e+00> : vector<16xf32>
    %78 = vector.multi_reduction <add>, %77, %cst_55 [1] : vector<16x16xf32> to vector<16xf32>
    %79 = vector.shape_cast %78 : vector<16xf32> to vector<16x1xf32>
    %80 = math.sqrt %79 : vector<16x1xf32>
    %cst_56 = arith.constant 9.99999974E-6 : f32
    %81 = vector.broadcast %cst_56 : f32 to vector<16x1xf32>
    %82 = arith.maximumf %72, %81 : vector<16x1xf32>
    %83 = vector.broadcast %82 : vector<16x1xf32> to vector<16x16xf32>
    %84 = arith.divf %19, %83 : vector<16x16xf32>
    %cst_57 = arith.constant 9.99999974E-6 : f32
    %85 = vector.broadcast %cst_57 : f32 to vector<16x1xf32>
    %86 = arith.maximumf %76, %85 : vector<16x1xf32>
    %87 = vector.broadcast %86 : vector<16x1xf32> to vector<16x16xf32>
    %88 = arith.divf %17, %87 : vector<16x16xf32>
    %89 = arith.mulf %84, %88 : vector<16x16xf32>
    %cst_58 = arith.constant dense<0.000000e+00> : vector<16xf32>
    %90 = vector.multi_reduction <add>, %89, %cst_58 [1] : vector<16x16xf32> to vector<16xf32>
    %91 = vector.shape_cast %90 : vector<16xf32> to vector<16x1xf32>
    %cst_59 = arith.constant 1.000000e+00 : f32
    %92 = vector.broadcast %cst_59 : f32 to vector<16x1xf32>
    %93 = arith.subf %92, %91 : vector<16x1xf32>
    %cst_60 = arith.constant 0.000000e+00 : f32
    %94 = vector.broadcast %cst_60 : f32 to vector<16x1xf32>
    %95 = arith.subf %94, %93 : vector<16x1xf32>
    %cst_61 = arith.constant 5.000000e-01 : f32
    %96 = vector.broadcast %cst_61 : f32 to vector<16x1xf32>
    %97 = arith.divf %95, %96 : vector<16x1xf32>
    %98 = math.exp %97 : vector<16x1xf32>
    %cst_62 = arith.constant 1.000000e+00 : f32
    %99 = vector.broadcast %cst_62 : f32 to vector<16x1xf32>
    %cst_63 = arith.constant 1.000000e+00 : f32
    %100 = vector.broadcast %cst_63 : f32 to vector<16x1xf32>
    %c0_i32 = arith.constant 0 : i32
    %c50_i32 = arith.constant 50 : i32
    %101 = arith.addi %c0_i32, %c50_i32 : i32
    %c1_i32 = arith.constant 1 : i32
    %102:2 = scf.for %arg25 = %c0_i32 to %101 step %c1_i32 iter_args(%arg26 = %99, %arg27 = %100) -> (vector<16x1xf32>, vector<16x1xf32>)  : i32 {
      %187 = arith.mulf %98, %arg26 : vector<16x1xf32>
      %188 = arith.mulf %187, %arg27 : vector<16x1xf32>
      %189 = tpu.reciprocal %188 : vector<16x1xf32> -> vector<16x1xf32>
      %190 = arith.mulf %189, %187 : vector<16x1xf32>
      %191 = tpu.reciprocal %190 : vector<16x1xf32> -> vector<16x1xf32>
      %192 = arith.mulf %189, %187 : vector<16x1xf32>
      %193 = arith.mulf %192, %191 : vector<16x1xf32>
      scf.yield %193, %191 : vector<16x1xf32>, vector<16x1xf32>
    }
    %103 = arith.mulf %93, %102#0 : vector<16x1xf32>
    %cst_64 = arith.constant dense<0.000000e+00> : vector<1xf32>
    %104 = vector.multi_reduction <add>, %103, %cst_64 [0] : vector<16x1xf32> to vector<1xf32>
    %105 = vector.shape_cast %104 : vector<1xf32> to vector<1x1xf32>
    %cst_65 = arith.constant 6.250000e-02 : f32
    %106 = vector.broadcast %cst_65 : f32 to vector<1x1xf32>
    %107 = arith.mulf %105, %106 : vector<1x1xf32>
    %c0_66 = arith.constant 0 : index
    %c0_67 = arith.constant 0 : index
    %108 = vector.load %arg23[%c0_66, %c0_67] : memref<1x1xf32, #tpu.memory_space<vmem>>, vector<1x1xf32>
    tpu.vector_store %arg23[%c0_66, %c0_67], %107 {strides = array<i32>} : memref<1x1xf32, #tpu.memory_space<vmem>>, vector<1x1xf32>,
    %cst_68 = arith.constant 9.99999996E-13 : f32
    %109 = vector.broadcast %cst_68 : f32 to vector<16x1xf32>
    %110 = arith.maximumf %72, %109 : vector<16x1xf32>
    %111 = vector.broadcast %110 : vector<16x1xf32> to vector<16x16xf32>
    %112 = arith.divf %19, %111 : vector<16x16xf32>
    %cst_69 = arith.constant 9.99999996E-13 : f32
    %113 = vector.broadcast %cst_69 : f32 to vector<16x1xf32>
    %114 = arith.maximumf %76, %113 : vector<16x1xf32>
    %115 = vector.broadcast %114 : vector<16x1xf32> to vector<16x16xf32>
    %116 = arith.divf %17, %115 : vector<16x16xf32>
    %cst_70 = arith.constant 9.99999996E-13 : f32
    %117 = vector.broadcast %cst_70 : f32 to vector<16x1xf32>
    %118 = arith.maximumf %80, %117 : vector<16x1xf32>
    %119 = vector.broadcast %118 : vector<16x1xf32> to vector<16x16xf32>
    %120 = arith.divf %18, %119 : vector<16x16xf32>
    %121 = arith.mulf %112, %116 : vector<16x16xf32>
    %cst_71 = arith.constant dense<0.000000e+00> : vector<16xf32>
    %122 = vector.multi_reduction <add>, %121, %cst_71 [1] : vector<16x16xf32> to vector<16xf32>
    %123 = vector.shape_cast %122 : vector<16xf32> to vector<16x1xf32>
    %124 = arith.mulf %112, %112 : vector<16x16xf32>
    %cst_72 = arith.constant dense<0.000000e+00> : vector<16xf32>
    %125 = vector.multi_reduction <add>, %124, %cst_72 [1] : vector<16x16xf32> to vector<16xf32>
    %126 = vector.shape_cast %125 : vector<16xf32> to vector<16x1xf32>
    %127 = math.sqrt %126 : vector<16x1xf32>
    %128 = arith.mulf %116, %116 : vector<16x16xf32>
    %cst_73 = arith.constant dense<0.000000e+00> : vector<16xf32>
    %129 = vector.multi_reduction <add>, %128, %cst_73 [1] : vector<16x16xf32> to vector<16xf32>
    %130 = vector.shape_cast %129 : vector<16xf32> to vector<16x1xf32>
    %131 = math.sqrt %130 : vector<16x1xf32>
    %132 = arith.mulf %127, %131 : vector<16x1xf32>
    %cst_74 = arith.constant 9.99999993E-9 : f32
    %133 = vector.broadcast %cst_74 : f32 to vector<16x1xf32>
    %134 = arith.maximumf %132, %133 : vector<16x1xf32>
    %135 = arith.divf %123, %134 : vector<16x1xf32>
    %cst_75 = arith.constant 1.500000e+00 : f32
    %136 = vector.broadcast %cst_75 : f32 to vector<16x1xf32>
    %137 = arith.mulf %136, %135 : vector<16x1xf32>
    %138 = arith.mulf %112, %120 : vector<16x16xf32>
    %cst_76 = arith.constant dense<0.000000e+00> : vector<16xf32>
    %139 = vector.multi_reduction <add>, %138, %cst_76 [1] : vector<16x16xf32> to vector<16xf32>
    %140 = vector.shape_cast %139 : vector<16xf32> to vector<16x1xf32>
    %141 = arith.mulf %112, %112 : vector<16x16xf32>
    %cst_77 = arith.constant dense<0.000000e+00> : vector<16xf32>
    %142 = vector.multi_reduction <add>, %141, %cst_77 [1] : vector<16x16xf32> to vector<16xf32>
    %143 = vector.shape_cast %142 : vector<16xf32> to vector<16x1xf32>
    %144 = math.sqrt %143 : vector<16x1xf32>
    %145 = arith.mulf %120, %120 : vector<16x16xf32>
    %cst_78 = arith.constant dense<0.000000e+00> : vector<16xf32>
    %146 = vector.multi_reduction <add>, %145, %cst_78 [1] : vector<16x16xf32> to vector<16xf32>
    %147 = vector.shape_cast %146 : vector<16xf32> to vector<16x1xf32>
    %148 = math.sqrt %147 : vector<16x1xf32>
    %149 = arith.mulf %144, %148 : vector<16x1xf32>
    %cst_79 = arith.constant 9.99999993E-9 : f32
    %150 = vector.broadcast %cst_79 : f32 to vector<16x1xf32>
    %151 = arith.maximumf %149, %150 : vector<16x1xf32>
    %152 = arith.divf %140, %151 : vector<16x1xf32>
    %cst_80 = arith.constant 1.500000e+00 : f32
    %153 = vector.broadcast %cst_80 : f32 to vector<16x1xf32>
    %154 = arith.mulf %153, %152 : vector<16x1xf32>
    %155 = arith.maximumf %137, %154 : vector<16x1xf32>
    %156 = arith.subf %137, %155 : vector<16x1xf32>
    %157 = math.exp %156 : vector<16x1xf32>
    %158 = arith.subf %154, %155 : vector<16x1xf32>
    %159 = math.exp %158 : vector<16x1xf32>
    %160 = arith.addf %157, %159 : vector<16x1xf32>
    %161 = math.log %160 : vector<16x1xf32>
    %162 = arith.addf %155, %161 : vector<16x1xf32>
    %163 = arith.subf %162, %137 : vector<16x1xf32>
    %c0_81 = arith.constant 0 : index
    %c0_82 = arith.constant 0 : index
    %164 = vector.load %arg2[%c0_81, %c0_82] : memref<1x16xi32, #tpu.memory_space<vmem>>, vector<1x16xi32>
    %165 = tpu.iota {dimensions = array<i32: 0>} : vector<8x16xi32>
    %166 = vector.broadcast %164 : vector<1x16xi32> to vector<8x16xi32>
    %167 = arith.cmpi eq, %165, %166 : vector<8x16xi32>
    %168 = arith.extui %167 : vector<8x16xi1> to vector<8x16xi32>
    %169 = arith.sitofp %168 : vector<8x16xi32> to vector<8x16xf32>
    %cst_83 = arith.constant dense<0.000000e+00> : vector<8xf32>
    %170 = vector.multi_reduction <add>, %169, %cst_83 [1] : vector<8x16xf32> to vector<8xf32>
    %171 = vector.shape_cast %170 : vector<8xf32> to vector<8x1xf32>
    %cst_84 = arith.constant dense<0.000000e+00> : vector<8x1xf32>
    %172 = tpu.matmul %169, %163, %cst_84 {dimension_numbers = #tpu.dot_dimension_numbers<[1], [0], [0], [1], [0, 0, 1, 1], [], []>} : vector<8x16xf32>, vector<16x1xf32>, vector<8x1xf32> -> vector<8x1xf32>
    %cst_85 = arith.constant 0.000000e+00 : f32
    %173 = vector.broadcast %cst_85 : f32 to vector<8x1xf32>
    %174 = arith.cmpf ogt, %171, %173 : vector<8x1xf32>
    %175 = arith.extui %174 : vector<8x1xi1> to vector<8x1xi32>
    %176 = arith.sitofp %175 : vector<8x1xi32> to vector<8x1xf32>
    %cst_86 = arith.constant 1.000000e+00 : f32
    %177 = vector.broadcast %cst_86 : f32 to vector<8x1xf32>
    %178 = arith.maximumf %171, %177 : vector<8x1xf32>
    %179 = arith.divf %172, %178 : vector<8x1xf32>
    %180 = arith.mulf %179, %176 : vector<8x1xf32>
    %cst_87 = arith.constant dense<0.000000e+00> : vector<1xf32>
    %181 = vector.multi_reduction <add>, %180, %cst_87 [0] : vector<8x1xf32> to vector<1xf32>
    %182 = vector.shape_cast %181 : vector<1xf32> to vector<1x1xf32>
    %cst_88 = arith.constant dense<0.000000e+00> : vector<1xf32>
    %183 = vector.multi_reduction <add>, %176, %cst_88 [0] : vector<8x1xf32> to vector<1xf32>
    %184 = vector.shape_cast %183 : vector<1xf32> to vector<1x1xf32>
    %185 = arith.divf %182, %184 : vector<1x1xf32>
    %c0_89 = arith.constant 0 : index
    %c0_90 = arith.constant 0 : index
    %186 = vector.load %arg24[%c0_89, %c0_90] : memref<1x1xf32, #tpu.memory_space<vmem>>, vector<1x1xf32>
    tpu.vector_store %arg24[%c0_89, %c0_90], %185 {strides = array<i32>} : memref<1x1xf32, #tpu.memory_space<vmem>>, vector<1x1xf32>,
    return
  }
  func.func @transform_0(%arg0: i32) -> (i32, i32) {
    %c0_i32 = arith.constant 0 : i32
    %c0_i32_0 = arith.constant 0 : i32
    %c0_i32_1 = arith.constant 0 : i32
    return %c0_i32, %c0_i32_0 : i32, i32
  }
  func.func @transform_1(%arg0: i32) -> (i32, i32) {
    %c0_i32 = arith.constant 0 : i32
    %c0_i32_0 = arith.constant 0 : i32
    %c0_i32_1 = arith.constant 0 : i32
    return %c0_i32, %c0_i32_0 : i32, i32
  }
  func.func @transform_2(%arg0: i32) -> (i32, i32) {
    %c0_i32 = arith.constant 0 : i32
    %c0_i32_0 = arith.constant 0 : i32
    %c0_i32_1 = arith.constant 0 : i32
    return %c0_i32, %c0_i32_0 : i32, i32
  }
  func.func @transform_3(%arg0: i32) -> (i32, i32) {
    %c0_i32 = arith.constant 0 : i32
    %c0_i32_0 = arith.constant 0 : i32
    %c0_i32_1 = arith.constant 0 : i32
    return %c0_i32, %c0_i32_0 : i32, i32
  }
  func.func @transform_4(%arg0: i32) -> (i32, i32) {
    %c0_i32 = arith.constant 0 : i32
    %c0_i32_0 = arith.constant 0 : i32
    %c0_i32_1 = arith.constant 0 : i32
    return %c0_i32, %c0_i32_0 : i32, i32
  }
  func.func @transform_5(%arg0: i32) -> (i32, i32) {
    %c0_i32 = arith.constant 0 : i32
    %c0_i32_0 = arith.constant 0 : i32
    %c0_i32_1 = arith.constant 0 : i32
    return %c0_i32, %c0_i32_0 : i32, i32
  }
  func.func @transform_6(%arg0: i32) -> (i32, i32) {
    %c0_i32 = arith.constant 0 : i32
    %c0_i32_0 = arith.constant 0 : i32
    %c0_i32_1 = arith.constant 0 : i32
    return %c0_i32, %c0_i32_0 : i32, i32
  }
  func.func @transform_7(%arg0: i32) -> (i32, i32) {
    %c0_i32 = arith.constant 0 : i32
    %c0_i32_0 = arith.constant 0 : i32
    %c0_i32_1 = arith.constant 0 : i32
    return %c0_i32, %c0_i32_0 : i32, i32
  }
  func.func @transform_8(%arg0: i32) -> (i32, i32) {
    %c0_i32 = arith.constant 0 : i32
    %c0_i32_0 = arith.constant 0 : i32
    %c0_i32_1 = arith.constant 0 : i32
    return %c0_i32, %c0_i32_0 : i32, i32
  }
  func.func @transform_9(%arg0: i32) -> (i32, i32) {
    %c0_i32 = arith.constant 0 : i32
    %c0_i32_0 = arith.constant 0 : i32
    %c0_i32_1 = arith.constant 0 : i32
    return %c0_i32, %c0_i32_0 : i32, i32
  }
  func.func @transform_10(%arg0: i32) -> (i32, i32) {
    %c0_i32 = arith.constant 0 : i32
    %c0_i32_0 = arith.constant 0 : i32
    %c0_i32_1 = arith.constant 0 : i32
    return %c0_i32, %c0_i32_0 : i32, i32
  }
  func.func @transform_11(%arg0: i32) -> (i32, i32) {
    %c0_i32 = arith.constant 0 : i32
    %c0_i32_0 = arith.constant 0 : i32
    %c0_i32_1 = arith.constant 0 : i32
    return %c0_i32, %c0_i32_0 : i32, i32
  }
  func.func @transform_12(%arg0: i32) -> (i32, i32) {
    %c0_i32 = arith.constant 0 : i32
    %c0_i32_0 = arith.constant 0 : i32
    %c0_i32_1 = arith.constant 0 : i32
    return %c0_i32, %c0_i32_0 : i32, i32
  }
  func.func @transform_13(%arg0: i32) -> (i32, i32) {
    %c0_i32 = arith.constant 0 : i32
    %c0_i32_0 = arith.constant 0 : i32
    %c0_i32_1 = arith.constant 0 : i32
    return %c0_i32, %c0_i32_0 : i32, i32
  }
  func.func @transform_14(%arg0: i32) -> (i32, i32) {
    %c0_i32 = arith.constant 0 : i32
    %c0_i32_0 = arith.constant 0 : i32
    %c0_i32_1 = arith.constant 0 : i32
    return %c0_i32, %c0_i32_0 : i32, i32
  }
  func.func @transform_15(%arg0: i32) -> (i32, i32) {
    %c0_i32 = arith.constant 0 : i32
    %c0_i32_0 = arith.constant 0 : i32
    %c0_i32_1 = arith.constant 0 : i32
    return %c0_i32, %c0_i32_0 : i32, i32
  }
  func.func @transform_16(%arg0: i32) -> (i32, i32) {
    %c0_i32 = arith.constant 0 : i32
    %c0_i32_0 = arith.constant 0 : i32
    %c0_i32_1 = arith.constant 0 : i32
    return %c0_i32, %c0_i32_0 : i32, i32
  }
  func.func @transform_17(%arg0: i32) -> (i32, i32) {
    %c0_i32 = arith.constant 0 : i32
    %c0_i32_0 = arith.constant 0 : i32
    %c0_i32_1 = arith.constant 0 : i32
    return %c0_i32, %c0_i32_0 : i32, i32
  }
  func.func @transform_18(%arg0: i32) -> (i32, i32) {
    %c0_i32 = arith.constant 0 : i32
    %c0_i32_0 = arith.constant 0 : i32
    %c0_i32_1 = arith.constant 0 : i32
    return %c0_i32, %c0_i32_0 : i32, i32
  }
  func.func @transform_19(%arg0: i32) -> (i32, i32) {
    %c0_i32 = arith.constant 0 : i32
    %c0_i32_0 = arith.constant 0 : i32
    %c0_i32_1 = arith.constant 0 : i32
    return %c0_i32, %c0_i32_0 : i32, i32
  }
  func.func @transform_20(%arg0: i32) -> (i32, i32) {
    %c0_i32 = arith.constant 0 : i32
    %c0_i32_0 = arith.constant 0 : i32
    %c0_i32_1 = arith.constant 0 : i32
    return %c0_i32, %c0_i32_0 : i32, i32
  }
  func.func @transform_21(%arg0: i32) -> (i32, i32) {
    %c0_i32 = arith.constant 0 : i32
    %c0_i32_0 = arith.constant 0 : i32
    %c0_i32_1 = arith.constant 0 : i32
    return %c0_i32, %c0_i32_0 : i32, i32
  }
  func.func @transform_22(%arg0: i32) -> (i32, i32) {
    %c0_i32 = arith.constant 0 : i32
    %c0_i32_0 = arith.constant 0 : i32
    %c0_i32_1 = arith.constant 0 : i32
    return %c0_i32, %c0_i32_0 : i32, i32
  }
  func.func @transform_23(%arg0: i32) -> (i32, i32) {
    %c0_i32 = arith.constant 0 : i32
    %c0_i32_0 = arith.constant 0 : i32
    %c0_i32_1 = arith.constant 0 : i32
    return %c0_i32, %c0_i32_0 : i32, i32
  }
}

</mosaic_0001>

<llo_original>
// kernel: model_forward.1
$region0: #{model_forward.1}
  #allocation0 [shape = 'u32[]', space=smem, size = 0x4, offset = 0x4, fixed_abs, tag = 'smem constant byte address 0x4 - core index']
  #allocation1 [shape = 'u32[144,128]{1,0:T(1,128)}', space=vmem, size = 0x12000, scoped, tag = 'internal scratch']
  %s0 = inlined_call_operand.vmem [shape: f32[32,32], index: 0, kind: input, shape index: {}]
  %s1 = inlined_call_operand.vmem [shape: s32[1,16], index: 1, kind: input, shape index: {}]
  %s2 = inlined_call_operand.vmem [shape: f32[32,128], index: 2, kind: input, shape index: {}]
  %s3 = inlined_call_operand.vmem [shape: f32[1,128], index: 3, kind: input, shape index: {}]
  %s4 = inlined_call_operand.vmem [shape: f32[128,32], index: 4, kind: input, shape index: {}]
  %s5 = inlined_call_operand.vmem [shape: f32[1,32], index: 5, kind: input, shape index: {}]
  %s6 = inlined_call_operand.vmem [shape: f32[32,64], index: 6, kind: input, shape index: {}]
  %s7 = inlined_call_operand.vmem [shape: f32[1,64], index: 7, kind: input, shape index: {}]
  %s8 = inlined_call_operand.vmem [shape: f32[64,32], index: 8, kind: input, shape index: {}]
  %s9 = inlined_call_operand.vmem [shape: f32[1,32], index: 9, kind: input, shape index: {}]
  %s10 = inlined_call_operand.vmem [shape: f32[16,64], index: 10, kind: input, shape index: {}]
  %s11 = inlined_call_operand.vmem [shape: f32[1,64], index: 11, kind: input, shape index: {}]
  %s12 = inlined_call_operand.vmem [shape: f32[1,64], index: 12, kind: input, shape index: {}]
  %s13 = inlined_call_operand.vmem [shape: f32[1,64], index: 13, kind: input, shape index: {}]
  %s14 = inlined_call_operand.vmem [shape: f32[1,64], index: 14, kind: input, shape index: {}]
  %s15 = inlined_call_operand.vmem [shape: f32[1,64], index: 15, kind: input, shape index: {}]
  %s16 = inlined_call_operand.vmem [shape: f32[64,8], index: 16, kind: input, shape index: {}]
  %s17 = inlined_call_operand.vmem [shape: f32[1,8], index: 17, kind: input, shape index: {}]
  %s18 = inlined_call_operand.vmem [shape: f32[16,32], index: 18, kind: output, shape index: {0}]
  %s19 = inlined_call_operand.hbm [shape: f32[16,16], index: 19, kind: output, shape index: {1}]
  %s20 = inlined_call_operand.vmem [shape: f32[16,32], index: 20, kind: output, shape index: {2}]
  %s21 = inlined_call_operand.vmem [shape: f32[16,8], index: 21, kind: output, shape index: {3}]
  %s22 = inlined_call_operand.hbm [shape: f32[1,1], index: 22, kind: output, shape index: {4}]
  %s23 = inlined_call_operand.hbm [shape: f32[1,1], index: 23, kind: output, shape index: {5}]
  %24 = xla_tuple %s18, %s19, %s20, %s21, %s22, %s23
  %s25 = sld [smem:[#allocation0]]
  $region129: #{model_forward.1} parent=0
    _
  %s27 = ssub.s32 1, %s25
  %s28 = scalar_select 0, %s27, %s25
  $region1: #{model_forward.1} parent=0
    #allocation2 [shape = 'u8[8192]{0}', space=vmem, size = 0x2000, scoped, tag = 'output window, operand 1, single buffered']
    #allocation3 [shape = 's32[1]{0}', space=sflag, size = 0x4, scoped, tag = 'scoped memory for model_forward.1']
    #allocation4 [shape = 'u8[512]{0}', space=vmem, size = 0x400, scoped, tag = 'output window, operand 4, single buffered']
    #allocation5 [shape = 's32[1]{0}', space=sflag, size = 0x4, scoped, tag = 'scoped memory for model_forward.1']
    #allocation6 [shape = 'u8[512]{0}', space=vmem, size = 0x400, scoped, tag = 'output window, operand 5, single buffered']
    %29 = vsyncpa [#allocation3], 0
    %30 = vsyncpa [#allocation5], 0
    // Predicated region
    $region2: #{model_forward.1} parent=1 // pred_check
      _
    $region3: #{model_forward.1} parent=1 // pred_check_branch
      %32 = sbr.rel (0) target = $region5
    $region4: #{model_forward.1} parent=1 // pred_region
      _
    $region5: #{model_forward.1} parent=1 // pred_fallthru
      _
    // Predicated region
    $region6: #{model_forward.1} parent=1 // pred_check
      _
    $region7: #{model_forward.1} parent=1 // pred_check_branch
      %34 = sbr.rel (0) target = $region9
    $region8: #{model_forward.1} parent=1 // pred_region
      _
    $region9: #{model_forward.1} parent=1 // pred_fallthru
      _
    // Predicated region
    $region10: #{model_forward.1} parent=1 // pred_check
      _
    $region11: #{model_forward.1} parent=1 // pred_check_branch
      %36 = sbr.rel (0) target = $region13
    $region12: #{model_forward.1} parent=1 // pred_region
      _
    $region13: #{model_forward.1} parent=1 // pred_fallthru
      _
    // Predicated region
    $region14: #{model_forward.1} parent=1 // pred_check
      _
    $region15: #{model_forward.1} parent=1 // pred_check_branch
      %38 = sbr.rel (0) target = $region17
    $region16: #{model_forward.1} parent=1 // pred_region
      _
    $region17: #{model_forward.1} parent=1 // pred_fallthru
      _
    // Predicated region
    $region18: #{model_forward.1} parent=1 // pred_check
      _
    $region19: #{model_forward.1} parent=1 // pred_check_branch
      %40 = sbr.rel (0) target = $region21
    $region20: #{model_forward.1} parent=1 // pred_region
      _
    $region21: #{model_forward.1} parent=1 // pred_fallthru
      _
    // Predicated region
    $region22: #{model_forward.1} parent=1 // pred_check
      _
    $region23: #{model_forward.1} parent=1 // pred_check_branch
      %42 = sbr.rel (0) target = $region25
    $region24: #{model_forward.1} parent=1 // pred_region
      _
    $region25: #{model_forward.1} parent=1 // pred_fallthru
      _
    // Predicated region
    $region26: #{model_forward.1} parent=1 // pred_check
      _
    $region27: #{model_forward.1} parent=1 // pred_check_branch
      %44 = sbr.rel (0) target = $region29
    $region28: #{model_forward.1} parent=1 // pred_region
      _
    $region29: #{model_forward.1} parent=1 // pred_fallthru
      _
    // Predicated region
    $region30: #{model_forward.1} parent=1 // pred_check
      _
    $region31: #{model_forward.1} parent=1 // pred_check_branch
      %46 = sbr.rel (0) target = $region33
    $region32: #{model_forward.1} parent=1 // pred_region
      _
    $region33: #{model_forward.1} parent=1 // pred_fallthru
      _
    // Predicated region
    $region34: #{model_forward.1} parent=1 // pred_check
      _
    $region35: #{model_forward.1} parent=1 // pred_check_branch
      %48 = sbr.rel (0) target = $region37
    $region36: #{model_forward.1} parent=1 // pred_region
      _
    $region37: #{model_forward.1} parent=1 // pred_fallthru
      _
    // Predicated region
    $region38: #{model_forward.1} parent=1 // pred_check
      _
    $region39: #{model_forward.1} parent=1 // pred_check_branch
      %50 = sbr.rel (0) target = $region41
    $region40: #{model_forward.1} parent=1 // pred_region
      _
    $region41: #{model_forward.1} parent=1 // pred_fallthru
      _
    // Predicated region
    $region42: #{model_forward.1} parent=1 // pred_check
      _
    $region43: #{model_forward.1} parent=1 // pred_check_branch
      %52 = sbr.rel (0) target = $region45
    $region44: #{model_forward.1} parent=1 // pred_region
      _
    $region45: #{model_forward.1} parent=1 // pred_fallthru
      _
    // Predicated region
    $region46: #{model_forward.1} parent=1 // pred_check
      _
    $region47: #{model_forward.1} parent=1 // pred_check_branch
      %54 = sbr.rel (0) target = $region49
    $region48: #{model_forward.1} parent=1 // pred_region
      _
    $region49: #{model_forward.1} parent=1 // pred_fallthru
      _
    // Predicated region
    $region50: #{model_forward.1} parent=1 // pred_check
      _
    $region51: #{model_forward.1} parent=1 // pred_check_branch
      %56 = sbr.rel (0) target = $region53
    $region52: #{model_forward.1} parent=1 // pred_region
      _
    $region53: #{model_forward.1} parent=1 // pred_fallthru
      _
    // Predicated region
    $region54: #{model_forward.1} parent=1 // pred_check
      _
    $region55: #{model_forward.1} parent=1 // pred_check_branch
      %58 = sbr.rel (0) target = $region57
    $region56: #{model_forward.1} parent=1 // pred_region
      _
    $region57: #{model_forward.1} parent=1 // pred_fallthru
      _
    // Predicated region
    $region58: #{model_forward.1} parent=1 // pred_check
      _
    $region59: #{model_forward.1} parent=1 // pred_check_branch
      %60 = sbr.rel (0) target = $region61
    $region60: #{model_forward.1} parent=1 // pred_region
      _
    $region61: #{model_forward.1} parent=1 // pred_fallthru
      _
    // Predicated region
    $region62: #{model_forward.1} parent=1 // pred_check
      _
    $region63: #{model_forward.1} parent=1 // pred_check_branch
      %62 = sbr.rel (0) target = $region65
    $region64: #{model_forward.1} parent=1 // pred_region
      _
    $region65: #{model_forward.1} parent=1 // pred_fallthru
      _
    // Predicated region
    $region66: #{model_forward.1} parent=1 // pred_check
      _
    $region67: #{model_forward.1} parent=1 // pred_check_branch
      %64 = sbr.rel (0) target = $region69
    $region68: #{model_forward.1} parent=1 // pred_region
      _
    $region69: #{model_forward.1} parent=1 // pred_fallthru
      _
    // Predicated region
    $region70: #{model_forward.1} parent=1 // pred_check
      _
    $region71: #{model_forward.1} parent=1 // pred_check_branch
      %66 = sbr.rel (0) target = $region73
    $region72: #{model_forward.1} parent=1 // pred_region
      _
    $region73: #{model_forward.1} parent=1 // pred_fallthru
      _
    %v67 = vld [vmem:[%s0] sm:$0xff]
    %v68 = vld [vmem:[%s0 + $0x8] sm:$0xff]
    %v69 = vld [vmem:[%s0 + $0x10] sm:$0xff]
    %v70 = vld [vmem:[%s0 + $0x18] sm:$0xff]
    %v71 = vld [vmem:[%s2] sm:$0xff]
    %v72 = vld [vmem:[%s2 + $0x8] sm:$0xff]
    %v73 = vld [vmem:[%s2 + $0x10] sm:$0xff]
    %v74 = vld [vmem:[%s2 + $0x18] sm:$0xff]
    %v75 = vld [vmem:[%s3] sm:$0x1]
    %v77 = vlaneseq
    %v78 = vshrl.u32 %v77, 7
    %v79 = vsub.s32 0, %v78
    %v80 = vrot.slane %v75, %v79
    %vm82 = vcmask 261120
    %v84 = vsel %vm82, %v67, 0
    %v87 = vsel %vm82, %v68, 0
    %v90 = vsel %vm82, %v69, 0
    %v93 = vsel %vm82, %v70, 0
    %95 = vmatprep.subr.mxu0 0.0
    %96 = vmatpush1.msra.mxu0 0.0
    %97 = vmatprep.subr.mxu0 0.0
    %98 = vmatpush1.msra.mxu0 0.0
    %99 = vmatprep.subr.mxu0 0.0
    %100 = vmatpush1.msra.mxu0 0.0
    %101 = vmatprep.subr.mxu0 0.0
    %102 = vmatpush1.msra.mxu0 0.0
    %103 = vmatprep.subr.mxu0 0.0
    %104 = vmatpush1.msra.mxu0 0.0
    %105 = vmatprep.subr.mxu0 0.0
    %106 = vmatpush1.msra.mxu0 0.0
    %107 = vmatprep.subr.mxu0 0.0
    %108 = vmatpush1.msra.mxu0 0.0
    %109 = vmatprep.subr.mxu0 0.0
    %110 = vmatpush1.msra.mxu0 0.0
    %111 = vmatprep.subr.mxu0 0.0
    %112 = vmatpush1.msra.mxu0 0.0
    %113 = vmatprep.subr.mxu0 0.0
    %114 = vmatpush1.msra.mxu0 0.0
    %115 = vmatprep.subr.mxu0 0.0
    %116 = vmatpush1.msra.mxu0 0.0
    %117 = vmatprep.subr.mxu0 0.0
    %118 = vmatpush1.msra.mxu0 0.0
    %119 = vmatprep.subr.mxu0 0.0
    %120 = vmatpush1.msra.mxu0 %v74
    %121 = vmatprep.subr.mxu0 0.0
    %122 = vmatpush1.msra.mxu0 %v73
    %123 = vmatprep.subr.mxu0 0.0
    %124 = vmatpush1.msra.mxu0 %v72
    %125 = vmatprep.subr.mxu0 0.0
    %126 = vmatpush1.msra.mxu0 %v71
    %127 = vmatprep.subr.mxu0 0.0
    %128 = vmatpush2.msra.mxu0 0.0
    %129 = vmatprep.subr.mxu0 0.0
    %130 = vmatpush2.msra.mxu0 0.0
    %131 = vmatprep.subr.mxu0 0.0
    %132 = vmatpush2.msra.mxu0 0.0
    %133 = vmatprep.subr.mxu0 0.0
    %134 = vmatpush2.msra.mxu0 0.0
    %135 = vmatprep.subr.mxu0 0.0
    %136 = vmatpush2.msra.mxu0 0.0
    %137 = vmatprep.subr.mxu0 0.0
    %138 = vmatpush2.msra.mxu0 0.0
    %139 = vmatprep.subr.mxu0 0.0
    %140 = vmatpush2.msra.mxu0 0.0
    %141 = vmatprep.subr.mxu0 0.0
    %142 = vmatpush2.msra.mxu0 0.0
    %143 = vmatprep.subr.mxu0 0.0
    %144 = vmatpush2.msra.mxu0 0.0
    %145 = vmatprep.subr.mxu0 0.0
    %146 = vmatpush2.msra.mxu0 0.0
    %147 = vmatprep.subr.mxu0 0.0
    %148 = vmatpush2.msra.mxu0 0.0
    %149 = vmatprep.subr.mxu0 0.0
    %150 = vmatpush2.msra.mxu0 0.0
    %151 = vmatprep.subr.mxu0 0.0
    %152 = vmatpush2.msra.mxu0 0.0
    %153 = vmatprep.subr.mxu0 0.0
    %154 = vmatpush2.msra.mxu0 0.0
    %155 = vmatprep.subr.mxu0 0.0
    %156 = vmatpush2.msra.mxu0 0.0
    %157 = vmatprep.subr.mxu0 0.0
    %158 = vmatpush2.msra.mxu0 0.0
    %159 = vmatprep.mubr.f32.mxu0 0.0
    %160 = vmatmul.mubr.f32.gmra.mxu0 %v84
    %v161 = vpop.f32.mrf.mxu0
    %v162 = vadd.f32 %v80, %v161
    %v163 = vpop.f32.mrf.mxu0
    %164 = vmatprep.mubr.f32.mxu0 0.0
    %165 = vmatmul.mubr.f32.gmra.mxu0 %v87
    %v166 = vpop.f32.mrf.mxu0
    %v167 = vadd.f32 %v80, %v166
    %v168 = vpop.f32.mrf.mxu0
    %169 = vmatprep.mubr.f32.mxu0 0.0
    %170 = vmatmul.mubr.f32.gmra.mxu0 %v90
    %v171 = vpop.f32.mrf.mxu0
    %v172 = vadd.f32 %v80, %v171
    %v173 = vpop.f32.mrf.mxu0
    %174 = vmatprep.mubr.f32.mxu0 0.0
    %175 = vmatmul.mubr.f32.gmra.mxu0 %v93
    %v176 = vpop.f32.mrf.mxu0
    %v177 = vadd.f32 %v80, %v176
    %v178 = vpop.f32.mrf.mxu0
    %179 = vdwg.mxu0
    %vm180 = vcmp.gt.f32.partialorder %v162, 0.0
    %vm181 = vcmp.gt.f32.partialorder %v167, 0.0
    %vm182 = vcmp.gt.f32.partialorder %v172, 0.0
    %vm183 = vcmp.gt.f32.partialorder %v177, 0.0
    %v184 = vmul.f32 %v162, 0.01
    %v185 = vmul.f32 %v167, 0.01
    %v186 = vmul.f32 %v172, 0.01
    %v187 = vmul.f32 %v177, 0.01
    %v188 = vsel %vm180, %v162, %v184
    %v189 = vsel %vm181, %v167, %v185
    %v190 = vsel %vm182, %v172, %v186
    %v191 = vsel %vm183, %v177, %v187
    %v192 = vld [vmem:[%s4] sm:$0xff]
    %v193 = vld [vmem:[%s4 + $0x8] sm:$0xff]
    %v194 = vld [vmem:[%s4 + $0x10] sm:$0xff]
    %v195 = vld [vmem:[%s4 + $0x18] sm:$0xff]
    %v196 = vld [vmem:[%s4 + $0x20] sm:$0xff]
    %v197 = vld [vmem:[%s4 + $0x28] sm:$0xff]
    %v198 = vld [vmem:[%s4 + $0x30] sm:$0xff]
    %v199 = vld [vmem:[%s4 + $0x38] sm:$0xff]
    %v200 = vld [vmem:[%s4 + $0x40] sm:$0xff]
    %v201 = vld [vmem:[%s4 + $0x48] sm:$0xff]
    %v202 = vld [vmem:[%s4 + $0x50] sm:$0xff]
    %v203 = vld [vmem:[%s4 + $0x58] sm:$0xff]
    %v204 = vld [vmem:[%s4 + $0x60] sm:$0xff]
    %v205 = vld [vmem:[%s4 + $0x68] sm:$0xff]
    %v206 = vld [vmem:[%s4 + $0x70] sm:$0xff]
    %v207 = vld [vmem:[%s4 + $0x78] sm:$0xff]
    %v208 = vld [vmem:[%s5] sm:$0x1]
    %v210 = vlaneseq
    %v211 = vshrl.u32 %v210, 7
    %v212 = vsub.s32 0, %v211
    %v213 = vrot.slane %v208, %v212
    %215 = vmatprep.subr.mxu0 0.0
    %216 = vmatpush1.msra.mxu0 %v207
    %217 = vmatprep.subr.mxu0 0.0
    %218 = vmatpush1.msra.mxu0 %v206
    %219 = vmatprep.subr.mxu0 0.0
    %220 = vmatpush1.msra.mxu0 %v205
    %221 = vmatprep.subr.mxu0 0.0
    %222 = vmatpush1.msra.mxu0 %v204
    %223 = vmatprep.subr.mxu0 0.0
    %224 = vmatpush1.msra.mxu0 %v203
    %225 = vmatprep.subr.mxu0 0.0
    %226 = vmatpush1.msra.mxu0 %v202
    %227 = vmatprep.subr.mxu0 0.0
    %228 = vmatpush1.msra.mxu0 %v201
    %229 = vmatprep.subr.mxu0 0.0
    %230 = vmatpush1.msra.mxu0 %v200
    %231 = vmatprep.subr.mxu0 0.0
    %232 = vmatpush1.msra.mxu0 %v199
    %233 = vmatprep.subr.mxu0 0.0
    %234 = vmatpush1.msra.mxu0 %v198
    %235 = vmatprep.subr.mxu0 0.0
    %236 = vmatpush1.msra.mxu0 %v197
    %237 = vmatprep.subr.mxu0 0.0
    %238 = vmatpush1.msra.mxu0 %v196
    %239 = vmatprep.subr.mxu0 0.0
    %240 = vmatpush1.msra.mxu0 %v195
    %241 = vmatprep.subr.mxu0 0.0
    %242 = vmatpush1.msra.mxu0 %v194
    %243 = vmatprep.subr.mxu0 0.0
    %244 = vmatpush1.msra.mxu0 %v193
    %245 = vmatprep.subr.mxu0 0.0
    %246 = vmatpush1.msra.mxu0 %v192
    %247 = vmatprep.subr.mxu0 0.0
    %248 = vmatpush2.msra.mxu0 0.0
    %249 = vmatprep.subr.mxu0 0.0
    %250 = vmatpush2.msra.mxu0 0.0
    %251 = vmatprep.subr.mxu0 0.0
    %252 = vmatpush2.msra.mxu0 0.0
    %253 = vmatprep.subr.mxu0 0.0
    %254 = vmatpush2.msra.mxu0 0.0
    %255 = vmatprep.subr.mxu0 0.0
    %256 = vmatpush2.msra.mxu0 0.0
    %257 = vmatprep.subr.mxu0 0.0
    %258 = vmatpush2.msra.mxu0 0.0
    %259 = vmatprep.subr.mxu0 0.0
    %260 = vmatpush2.msra.mxu0 0.0
    %261 = vmatprep.subr.mxu0 0.0
    %262 = vmatpush2.msra.mxu0 0.0
    %263 = vmatprep.subr.mxu0 0.0
    %264 = vmatpush2.msra.mxu0 0.0
    %265 = vmatprep.subr.mxu0 0.0
    %266 = vmatpush2.msra.mxu0 0.0
    %267 = vmatprep.subr.mxu0 0.0
    %268 = vmatpush2.msra.mxu0 0.0
    %269 = vmatprep.subr.mxu0 0.0
    %270 = vmatpush2.msra.mxu0 0.0
    %271 = vmatprep.subr.mxu0 0.0
    %272 = vmatpush2.msra.mxu0 0.0
    %273 = vmatprep.subr.mxu0 0.0
    %274 = vmatpush2.msra.mxu0 0.0
    %275 = vmatprep.subr.mxu0 0.0
    %276 = vmatpush2.msra.mxu0 0.0
    %277 = vmatprep.subr.mxu0 0.0
    %278 = vmatpush2.msra.mxu0 0.0
    %279 = vmatprep.mubr.f32.mxu0 0.0
    %280 = vmatmul.mubr.f32.gmra.mxu0 %v188
    %v281 = vpop.f32.mrf.mxu0
    %v282 = vadd.f32 %v213, %v281
    %v283 = vpop.f32.mrf.mxu0
    %284 = vmatprep.mubr.f32.mxu0 0.0
    %285 = vmatmul.mubr.f32.gmra.mxu0 %v189
    %v286 = vpop.f32.mrf.mxu0
    %v287 = vadd.f32 %v213, %v286
    %v288 = vpop.f32.mrf.mxu0
    %289 = vmatprep.mubr.f32.mxu0 0.0
    %290 = vmatmul.mubr.f32.gmra.mxu0 %v190
    %v291 = vpop.f32.mrf.mxu0
    %v292 = vadd.f32 %v213, %v291
    %v293 = vpop.f32.mrf.mxu0
    %294 = vmatprep.mubr.f32.mxu0 0.0
    %295 = vmatmul.mubr.f32.gmra.mxu0 %v191
    %v296 = vpop.f32.mrf.mxu0
    %v297 = vadd.f32 %v213, %v296
    %v298 = vpop.f32.mrf.mxu0
    %299 = vdwg.mxu0
    %300 = vst.msk [vmem:[%s18] sm:$0xff] %vm82, %v282
    %301 = vst.msk [vmem:[%s18 + $0x8] sm:$0xff] %vm82, %v287
    %vm302 = vcmask 130048
    %303 = vst.msk [vmem:[#allocation2] sm:$0xff] %vm302, %v292
    %304 = vst.msk [vmem:[#allocation2 + $0x8] sm:$0xff] %vm302, %v297
    %v305 = vld [vmem:[%s6] sm:$0xff]
    %v306 = vld [vmem:[%s6 + $0x8] sm:$0xff]
    %v307 = vld [vmem:[%s6 + $0x10] sm:$0xff]
    %v308 = vld [vmem:[%s6 + $0x18] sm:$0xff]
    %v309 = vld [vmem:[%s7] sm:$0x1]
    %v311 = vlaneseq
    %v312 = vshrl.u32 %v311, 7
    %v313 = vsub.s32 0, %v312
    %v314 = vrot.slane %v309, %v313
    %v317 = vsel %vm82, %v282, 0
    %v320 = vsel %vm82, %v287, 0
    %322 = vmatprep.subr.mxu0 0.0
    %323 = vmatpush1.msra.mxu0 0.0
    %324 = vmatprep.subr.mxu0 0.0
    %325 = vmatpush1.msra.mxu0 0.0
    %326 = vmatprep.subr.mxu0 0.0
    %327 = vmatpush1.msra.mxu0 0.0
    %328 = vmatprep.subr.mxu0 0.0
    %329 = vmatpush1.msra.mxu0 0.0
    %330 = vmatprep.subr.mxu0 0.0
    %331 = vmatpush1.msra.mxu0 0.0
    %332 = vmatprep.subr.mxu0 0.0
    %333 = vmatpush1.msra.mxu0 0.0
    %334 = vmatprep.subr.mxu0 0.0
    %335 = vmatpush1.msra.mxu0 0.0
    %336 = vmatprep.subr.mxu0 0.0
    %337 = vmatpush1.msra.mxu0 0.0
    %338 = vmatprep.subr.mxu0 0.0
    %339 = vmatpush1.msra.mxu0 0.0
    %340 = vmatprep.subr.mxu0 0.0
    %341 = vmatpush1.msra.mxu0 0.0
    %342 = vmatprep.subr.mxu0 0.0
    %343 = vmatpush1.msra.mxu0 0.0
    %344 = vmatprep.subr.mxu0 0.0
    %345 = vmatpush1.msra.mxu0 0.0
    %346 = vmatprep.subr.mxu0 0.0
    %347 = vmatpush1.msra.mxu0 %v308
    %348 = vmatprep.subr.mxu0 0.0
    %349 = vmatpush1.msra.mxu0 %v307
    %350 = vmatprep.subr.mxu0 0.0
    %351 = vmatpush1.msra.mxu0 %v306
    %352 = vmatprep.subr.mxu0 0.0
    %353 = vmatpush1.msra.mxu0 %v305
    %354 = vmatprep.subr.mxu0 0.0
    %355 = vmatpush2.msra.mxu0 0.0
    %356 = vmatprep.subr.mxu0 0.0
    %357 = vmatpush2.msra.mxu0 0.0
    %358 = vmatprep.subr.mxu0 0.0
    %359 = vmatpush2.msra.mxu0 0.0
    %360 = vmatprep.subr.mxu0 0.0
    %361 = vmatpush2.msra.mxu0 0.0
    %362 = vmatprep.subr.mxu0 0.0
    %363 = vmatpush2.msra.mxu0 0.0
    %364 = vmatprep.subr.mxu0 0.0
    %365 = vmatpush2.msra.mxu0 0.0
    %366 = vmatprep.subr.mxu0 0.0
    %367 = vmatpush2.msra.mxu0 0.0
    %368 = vmatprep.subr.mxu0 0.0
    %369 = vmatpush2.msra.mxu0 0.0
    %370 = vmatprep.subr.mxu0 0.0
    %371 = vmatpush2.msra.mxu0 0.0
    %372 = vmatprep.subr.mxu0 0.0
    %373 = vmatpush2.msra.mxu0 0.0
    %374 = vmatprep.subr.mxu0 0.0
    %375 = vmatpush2.msra.mxu0 0.0
    %376 = vmatprep.subr.mxu0 0.0
    %377 = vmatpush2.msra.mxu0 0.0
    %378 = vmatprep.subr.mxu0 0.0
    %379 = vmatpush2.msra.mxu0 0.0
    %380 = vmatprep.subr.mxu0 0.0
    %381 = vmatpush2.msra.mxu0 0.0
    %382 = vmatprep.subr.mxu0 0.0
    %383 = vmatpush2.msra.mxu0 0.0
    %384 = vmatprep.subr.mxu0 0.0
    %385 = vmatpush2.msra.mxu0 0.0
    %386 = vmatprep.mubr.f32.mxu0 0.0
    %387 = vmatmul.mubr.f32.gmra.mxu0 %v317
    %v388 = vpop.f32.mrf.mxu0
    %v389 = vadd.f32 %v314, %v388
    %v390 = vpop.f32.mrf.mxu0
    %391 = vmatprep.mubr.f32.mxu0 0.0
    %392 = vmatmul.mubr.f32.gmra.mxu0 %v320
    %v393 = vpop.f32.mrf.mxu0
    %v394 = vadd.f32 %v314, %v393
    %v395 = vpop.f32.mrf.mxu0
    %396 = vdwg.mxu0
    %vm397 = vcmp.gt.f32.partialorder %v389, 0.0
    %vm398 = vcmp.gt.f32.partialorder %v394, 0.0
    %v399 = vmul.f32 %v389, 0.01
    %v400 = vmul.f32 %v394, 0.01
    %v401 = vsel %vm397, %v389, %v399
    %v402 = vsel %vm398, %v394, %v400
    %v403 = vld [vmem:[%s8] sm:$0xff]
    %v404 = vld [vmem:[%s8 + $0x8] sm:$0xff]
    %v405 = vld [vmem:[%s8 + $0x10] sm:$0xff]
    %v406 = vld [vmem:[%s8 + $0x18] sm:$0xff]
    %v407 = vld [vmem:[%s8 + $0x20] sm:$0xff]
    %v408 = vld [vmem:[%s8 + $0x28] sm:$0xff]
    %v409 = vld [vmem:[%s8 + $0x30] sm:$0xff]
    %v410 = vld [vmem:[%s8 + $0x38] sm:$0xff]
    %v411 = vld [vmem:[%s9] sm:$0x1]
    %v413 = vlaneseq
    %v414 = vshrl.u32 %v413, 7
    %v415 = vsub.s32 0, %v414
    %v416 = vrot.slane %v411, %v415
    %vm418 = vcmask 523264
    %v420 = vsel %vm418, %v401, 0
    %v423 = vsel %vm418, %v402, 0
    %425 = vmatprep.subr.mxu0 0.0
    %426 = vmatpush1.msra.mxu0 0.0
    %427 = vmatprep.subr.mxu0 0.0
    %428 = vmatpush1.msra.mxu0 0.0
    %429 = vmatprep.subr.mxu0 0.0
    %430 = vmatpush1.msra.mxu0 0.0
    %431 = vmatprep.subr.mxu0 0.0
    %432 = vmatpush1.msra.mxu0 0.0
    %433 = vmatprep.subr.mxu0 0.0
    %434 = vmatpush1.msra.mxu0 0.0
    %435 = vmatprep.subr.mxu0 0.0
    %436 = vmatpush1.msra.mxu0 0.0
    %437 = vmatprep.subr.mxu0 0.0
    %438 = vmatpush1.msra.mxu0 0.0
    %439 = vmatprep.subr.mxu0 0.0
    %440 = vmatpush1.msra.mxu0 0.0
    %441 = vmatprep.subr.mxu0 0.0
    %442 = vmatpush1.msra.mxu0 %v410
    %443 = vmatprep.subr.mxu0 0.0
    %444 = vmatpush1.msra.mxu0 %v409
    %445 = vmatprep.subr.mxu0 0.0
    %446 = vmatpush1.msra.mxu0 %v408
    %447 = vmatprep.subr.mxu0 0.0
    %448 = vmatpush1.msra.mxu0 %v407
    %449 = vmatprep.subr.mxu0 0.0
    %450 = vmatpush1.msra.mxu0 %v406
    %451 = vmatprep.subr.mxu0 0.0
    %452 = vmatpush1.msra.mxu0 %v405
    %453 = vmatprep.subr.mxu0 0.0
    %454 = vmatpush1.msra.mxu0 %v404
    %455 = vmatprep.subr.mxu0 0.0
    %456 = vmatpush1.msra.mxu0 %v403
    %457 = vmatprep.subr.mxu0 0.0
    %458 = vmatpush2.msra.mxu0 0.0
    %459 = vmatprep.subr.mxu0 0.0
    %460 = vmatpush2.msra.mxu0 0.0
    %461 = vmatprep.subr.mxu0 0.0
    %462 = vmatpush2.msra.mxu0 0.0
    %463 = vmatprep.subr.mxu0 0.0
    %464 = vmatpush2.msra.mxu0 0.0
    %465 = vmatprep.subr.mxu0 0.0
    %466 = vmatpush2.msra.mxu0 0.0
    %467 = vmatprep.subr.mxu0 0.0
    %468 = vmatpush2.msra.mxu0 0.0
    %469 = vmatprep.subr.mxu0 0.0
    %470 = vmatpush2.msra.mxu0 0.0
    %471 = vmatprep.subr.mxu0 0.0
    %472 = vmatpush2.msra.mxu0 0.0
    %473 = vmatprep.subr.mxu0 0.0
    %474 = vmatpush2.msra.mxu0 0.0
    %475 = vmatprep.subr.mxu0 0.0
    %476 = vmatpush2.msra.mxu0 0.0
    %477 = vmatprep.subr.mxu0 0.0
    %478 = vmatpush2.msra.mxu0 0.0
    %479 = vmatprep.subr.mxu0 0.0
    %480 = vmatpush2.msra.mxu0 0.0
    %481 = vmatprep.subr.mxu0 0.0
    %482 = vmatpush2.msra.mxu0 0.0
    %483 = vmatprep.subr.mxu0 0.0
    %484 = vmatpush2.msra.mxu0 0.0
    %485 = vmatprep.subr.mxu0 0.0
    %486 = vmatpush2.msra.mxu0 0.0
    %487 = vmatprep.subr.mxu0 0.0
    %488 = vmatpush2.msra.mxu0 0.0
    %489 = vmatprep.mubr.f32.mxu0 0.0
    %490 = vmatmul.mubr.f32.gmra.mxu0 %v420
    %v491 = vpop.f32.mrf.mxu0
    %v492 = vadd.f32 %v416, %v491
    %v493 = vpop.f32.mrf.mxu0
    %494 = vmatprep.mubr.f32.mxu0 0.0
    %495 = vmatmul.mubr.f32.gmra.mxu0 %v423
    %v496 = vpop.f32.mrf.mxu0
    %v497 = vadd.f32 %v416, %v496
    %v498 = vpop.f32.mrf.mxu0
    %499 = vdwg.mxu0
    %500 = vst.msk [vmem:[%s20] sm:$0xff] %vm82, %v492
    %501 = vst.msk [vmem:[%s20 + $0x8] sm:$0xff] %vm82, %v497
    %v502 = vld [vmem:[%s10] sm:$0xff]
    %v503 = vld [vmem:[%s10 + $0x8] sm:$0xff]
    %v504 = vld [vmem:[%s11] sm:$0x1]
    %v506 = vlaneseq
    %v507 = vshrl.u32 %v506, 7
    %v508 = vsub.s32 0, %v507
    %v509 = vrot.slane %v504, %v508
    %v511 = vsel %vm302, %v282, 0
    %v513 = vsel %vm302, %v287, 0
    %515 = vmatprep.subr.mxu0 0.0
    %516 = vmatpush1.msra.mxu0 0.0
    %517 = vmatprep.subr.mxu0 0.0
    %518 = vmatpush1.msra.mxu0 0.0
    %519 = vmatprep.subr.mxu0 0.0
    %520 = vmatpush1.msra.mxu0 0.0
    %521 = vmatprep.subr.mxu0 0.0
    %522 = vmatpush1.msra.mxu0 0.0
    %523 = vmatprep.subr.mxu0 0.0
    %524 = vmatpush1.msra.mxu0 0.0
    %525 = vmatprep.subr.mxu0 0.0
    %526 = vmatpush1.msra.mxu0 0.0
    %527 = vmatprep.subr.mxu0 0.0
    %528 = vmatpush1.msra.mxu0 0.0
    %529 = vmatprep.subr.mxu0 0.0
    %530 = vmatpush1.msra.mxu0 0.0
    %531 = vmatprep.subr.mxu0 0.0
    %532 = vmatpush1.msra.mxu0 0.0
    %533 = vmatprep.subr.mxu0 0.0
    %534 = vmatpush1.msra.mxu0 0.0
    %535 = vmatprep.subr.mxu0 0.0
    %536 = vmatpush1.msra.mxu0 0.0
    %537 = vmatprep.subr.mxu0 0.0
    %538 = vmatpush1.msra.mxu0 0.0
    %539 = vmatprep.subr.mxu0 0.0
    %540 = vmatpush1.msra.mxu0 0.0
    %541 = vmatprep.subr.mxu0 0.0
    %542 = vmatpush1.msra.mxu0 0.0
    %543 = vmatprep.subr.mxu0 0.0
    %544 = vmatpush1.msra.mxu0 %v503
    %545 = vmatprep.subr.mxu0 0.0
    %546 = vmatpush1.msra.mxu0 %v502
    %547 = vmatprep.subr.mxu0 0.0
    %548 = vmatpush2.msra.mxu0 0.0
    %549 = vmatprep.subr.mxu0 0.0
    %550 = vmatpush2.msra.mxu0 0.0
    %551 = vmatprep.subr.mxu0 0.0
    %552 = vmatpush2.msra.mxu0 0.0
    %553 = vmatprep.subr.mxu0 0.0
    %554 = vmatpush2.msra.mxu0 0.0
    %555 = vmatprep.subr.mxu0 0.0
    %556 = vmatpush2.msra.mxu0 0.0
    %557 = vmatprep.subr.mxu0 0.0
    %558 = vmatpush2.msra.mxu0 0.0
    %559 = vmatprep.subr.mxu0 0.0
    %560 = vmatpush2.msra.mxu0 0.0
    %561 = vmatprep.subr.mxu0 0.0
    %562 = vmatpush2.msra.mxu0 0.0
    %563 = vmatprep.subr.mxu0 0.0
    %564 = vmatpush2.msra.mxu0 0.0
    %565 = vmatprep.subr.mxu0 0.0
    %566 = vmatpush2.msra.mxu0 0.0
    %567 = vmatprep.subr.mxu0 0.0
    %568 = vmatpush2.msra.mxu0 0.0
    %569 = vmatprep.subr.mxu0 0.0
    %570 = vmatpush2.msra.mxu0 0.0
    %571 = vmatprep.subr.mxu0 0.0
    %572 = vmatpush2.msra.mxu0 0.0
    %573 = vmatprep.subr.mxu0 0.0
    %574 = vmatpush2.msra.mxu0 0.0
    %575 = vmatprep.subr.mxu0 0.0
    %576 = vmatpush2.msra.mxu0 0.0
    %577 = vmatprep.subr.mxu0 0.0
    %578 = vmatpush2.msra.mxu0 0.0
    %579 = vmatprep.mubr.f32.mxu0 0.0
    %580 = vmatmul.mubr.f32.gmra.mxu0 %v511
    %v581 = vpop.f32.mrf.mxu0
    %v582 = vadd.f32 %v509, %v581
    %v583 = vpop.f32.mrf.mxu0
    %584 = vmatprep.mubr.f32.mxu0 0.0
    %585 = vmatmul.mubr.f32.gmra.mxu0 %v513
    %v586 = vpop.f32.mrf.mxu0
    %v587 = vadd.f32 %v509, %v586
    %v588 = vpop.f32.mrf.mxu0
    %589 = vdwg.mxu0
    %v590 = vld [vmem:[%s14] sm:$0x1]
    %v592 = vlaneseq
    %v593 = vshrl.u32 %v592, 7
    %v594 = vsub.s32 0, %v593
    %v595 = vrot.slane %v590, %v594
    %v597 = vsub.f32 %v582, %v595
    %v598 = vsub.f32 %v587, %v595
    %v599 = vld [vmem:[%s15] sm:$0x1]
    %v600 = vadd.f32 %v599, 1e-05
    %v601 = vrsqrt.pop %v600
    %v603 = vlaneseq
    %v604 = vshrl.u32 %v603, 7
    %v605 = vsub.s32 0, %v604
    %v606 = vrot.slane %v601, %v605
    %v608 = vmul.f32 %v597, %v606
    %v609 = vmul.f32 %v598, %v606
    %v610 = vld [vmem:[%s12] sm:$0x1]
    %v612 = vlaneseq
    %v613 = vshrl.u32 %v612, 7
    %v614 = vsub.s32 0, %v613
    %v615 = vrot.slane %v610, %v614
    %v617 = vmul.f32 %v608, %v615
    %v618 = vmul.f32 %v609, %v615
    %v619 = vld [vmem:[%s13] sm:$0x1]
    %v621 = vlaneseq
    %v622 = vshrl.u32 %v621, 7
    %v623 = vsub.s32 0, %v622
    %v624 = vrot.slane %v619, %v623
    %v626 = vadd.f32 %v617, %v624
    %v627 = vadd.f32 %v618, %v624
    %vm628 = vcmp.gt.f32.partialorder %v626, 0.0
    %vm629 = vcmp.gt.f32.partialorder %v627, 0.0
    %v630 = vmul.f32 %v626, 0.01
    %v631 = vmul.f32 %v627, 0.01
    %v632 = vsel %vm628, %v626, %v630
    %v633 = vsel %vm629, %v627, %v631
    %v634 = vld [vmem:[%s16] sm:$0xff]
    %v635 = vld [vmem:[%s16 + $0x8] sm:$0xff]
    %v636 = vld [vmem:[%s16 + $0x10] sm:$0xff]
    %v637 = vld [vmem:[%s16 + $0x18] sm:$0xff]
    %v638 = vld [vmem:[%s16 + $0x20] sm:$0xff]
    %v639 = vld [vmem:[%s16 + $0x28] sm:$0xff]
    %v640 = vld [vmem:[%s16 + $0x30] sm:$0xff]
    %v641 = vld [vmem:[%s16 + $0x38] sm:$0xff]
    %v642 = vld [vmem:[%s17] sm:$0x1]
    %v644 = vlaneseq
    %v645 = vshrl.u32 %v644, 7
    %v646 = vsub.s32 0, %v645
    %v647 = vrot.slane %v642, %v646
    %v650 = vsel %vm418, %v632, 0
    %v653 = vsel %vm418, %v633, 0
    %655 = vmatprep.subr.mxu0 0.0
    %656 = vmatpush1.msra.mxu0 0.0
    %657 = vmatprep.subr.mxu0 0.0
    %658 = vmatpush1.msra.mxu0 0.0
    %659 = vmatprep.subr.mxu0 0.0
    %660 = vmatpush1.msra.mxu0 0.0
    %661 = vmatprep.subr.mxu0 0.0
    %662 = vmatpush1.msra.mxu0 0.0
    %663 = vmatprep.subr.mxu0 0.0
    %664 = vmatpush1.msra.mxu0 0.0
    %665 = vmatprep.subr.mxu0 0.0
    %666 = vmatpush1.msra.mxu0 0.0
    %667 = vmatprep.subr.mxu0 0.0
    %668 = vmatpush1.msra.mxu0 0.0
    %669 = vmatprep.subr.mxu0 0.0
    %670 = vmatpush1.msra.mxu0 0.0
    %671 = vmatprep.subr.mxu0 0.0
    %672 = vmatpush1.msra.mxu0 %v641
    %673 = vmatprep.subr.mxu0 0.0
    %674 = vmatpush1.msra.mxu0 %v640
    %675 = vmatprep.subr.mxu0 0.0
    %676 = vmatpush1.msra.mxu0 %v639
    %677 = vmatprep.subr.mxu0 0.0
    %678 = vmatpush1.msra.mxu0 %v638
    %679 = vmatprep.subr.mxu0 0.0
    %680 = vmatpush1.msra.mxu0 %v637
    %681 = vmatprep.subr.mxu0 0.0
    %682 = vmatpush1.msra.mxu0 %v636
    %683 = vmatprep.subr.mxu0 0.0
    %684 = vmatpush1.msra.mxu0 %v635
    %685 = vmatprep.subr.mxu0 0.0
    %686 = vmatpush1.msra.mxu0 %v634
    %687 = vmatprep.subr.mxu0 0.0
    %688 = vmatpush2.msra.mxu0 0.0
    %689 = vmatprep.subr.mxu0 0.0
    %690 = vmatpush2.msra.mxu0 0.0
    %691 = vmatprep.subr.mxu0 0.0
    %692 = vmatpush2.msra.mxu0 0.0
    %693 = vmatprep.subr.mxu0 0.0
    %694 = vmatpush2.msra.mxu0 0.0
    %695 = vmatprep.subr.mxu0 0.0
    %696 = vmatpush2.msra.mxu0 0.0
    %697 = vmatprep.subr.mxu0 0.0
    %698 = vmatpush2.msra.mxu0 0.0
    %699 = vmatprep.subr.mxu0 0.0
    %700 = vmatpush2.msra.mxu0 0.0
    %701 = vmatprep.subr.mxu0 0.0
    %702 = vmatpush2.msra.mxu0 0.0
    %703 = vmatprep.subr.mxu0 0.0
    %704 = vmatpush2.msra.mxu0 0.0
    %705 = vmatprep.subr.mxu0 0.0
    %706 = vmatpush2.msra.mxu0 0.0
    %707 = vmatprep.subr.mxu0 0.0
    %708 = vmatpush2.msra.mxu0 0.0
    %709 = vmatprep.subr.mxu0 0.0
    %710 = vmatpush2.msra.mxu0 0.0
    %711 = vmatprep.subr.mxu0 0.0
    %712 = vmatpush2.msra.mxu0 0.0
    %713 = vmatprep.subr.mxu0 0.0
    %714 = vmatpush2.msra.mxu0 0.0
    %715 = vmatprep.subr.mxu0 0.0
    %716 = vmatpush2.msra.mxu0 0.0
    %717 = vmatprep.subr.mxu0 0.0
    %718 = vmatpush2.msra.mxu0 0.0
    %719 = vmatprep.mubr.f32.mxu0 0.0
    %720 = vmatmul.mubr.f32.gmra.mxu0 %v650
    %v721 = vpop.f32.mrf.mxu0
    %v722 = vadd.f32 %v647, %v721
    %v723 = vpop.f32.mrf.mxu0
    %724 = vmatprep.mubr.f32.mxu0 0.0
    %725 = vmatmul.mubr.f32.gmra.mxu0 %v653
    %v726 = vpop.f32.mrf.mxu0
    %v727 = vadd.f32 %v647, %v726
    %v728 = vpop.f32.mrf.mxu0
    %729 = vdwg.mxu0
    %vm730 = vcmask 64512
    %731 = vst.msk [vmem:[%s21] sm:$0xff] %vm730, %v722
    %732 = vst.msk [vmem:[%s21 + $0x8] sm:$0xff] %vm730, %v727
    %v733 = vmul.f32 %v292, %v292
    %v734 = vmul.f32 %v297, %v297
    %v735 = vsel %vm302, %v733, 0.0
    %736 = vadd.xlane.f32.xlu0 %v735
    %v737 = vpop.xlane.xlu0 %736
    %v738 = vsel %vm302, %v734, 0.0
    %739 = vadd.xlane.f32.xlu0 %v738
    %v740 = vpop.xlane.xlu0 %739
    %v741 = vrsqrt.pop %v737
    %v742 = vmul.f32 %v737, %v741
    %vm743 = vcmp.eq.f32.partialorder %v737, inf
    %v744 = vsel %vm743, %v737, %v742
    %vm745 = vcmp.eq.f32.partialorder %v737, 0.0
    %v746 = vand.u32 %v737, 2147483648
    %v747 = vsel %vm745, %v746, %v744
    %v748 = vrsqrt.pop %v740
    %v749 = vmul.f32 %v740, %v748
    %vm750 = vcmp.eq.f32.partialorder %v740, inf
    %v751 = vsel %vm750, %v740, %v749
    %vm752 = vcmp.eq.f32.partialorder %v740, 0.0
    %v753 = vand.u32 %v740, 2147483648
    %v754 = vsel %vm752, %v753, %v751
    %v755 = vmul.f32 %v282, %v282
    %v756 = vmul.f32 %v287, %v287
    %v757 = vsel %vm302, %v755, 0.0
    %758 = vadd.xlane.f32.xlu0 %v757
    %v759 = vpop.xlane.xlu0 %758
    %v760 = vsel %vm302, %v756, 0.0
    %761 = vadd.xlane.f32.xlu0 %v760
    %v762 = vpop.xlane.xlu0 %761
    %v763 = vrsqrt.pop %v759
    %v764 = vmul.f32 %v759, %v763
    %vm765 = vcmp.eq.f32.partialorder %v759, inf
    %v766 = vsel %vm765, %v759, %v764
    %vm767 = vcmp.eq.f32.partialorder %v759, 0.0
    %v768 = vand.u32 %v759, 2147483648
    %v769 = vsel %vm767, %v768, %v766
    %v770 = vrsqrt.pop %v762
    %v771 = vmul.f32 %v762, %v770
    %vm772 = vcmp.eq.f32.partialorder %v762, inf
    %v773 = vsel %vm772, %v762, %v771
    %vm774 = vcmp.eq.f32.partialorder %v762, 0.0
    %v775 = vand.u32 %v762, 2147483648
    %v776 = vsel %vm774, %v775, %v773
    %779 = vrot.lane.b32.xlu0 %v755, 112
    %v780 = vpop.permute.xlu0 %779
    %781 = vrot.lane.b32.xlu0 %v756, 112
    %v782 = vpop.permute.xlu0 %781
    %v785 = vsel %vm302, %v780, 0.0
    %786 = vadd.xlane.f32.xlu0 %v785
    %v787 = vpop.xlane.xlu0 %786
    %v788 = vsel %vm302, %v782, 0.0
    %789 = vadd.xlane.f32.xlu0 %v788
    %v790 = vpop.xlane.xlu0 %789
    %v791 = vrsqrt.pop %v787
    %v792 = vmul.f32 %v787, %v791
    %vm793 = vcmp.eq.f32.partialorder %v787, inf
    %v794 = vsel %vm793, %v787, %v792
    %vm795 = vcmp.eq.f32.partialorder %v787, 0.0
    %v796 = vand.u32 %v787, 2147483648
    %v797 = vsel %vm795, %v796, %v794
    %v798 = vrsqrt.pop %v790
    %v799 = vmul.f32 %v790, %v798
    %vm800 = vcmp.eq.f32.partialorder %v790, inf
    %v801 = vsel %vm800, %v790, %v799
    %vm802 = vcmp.eq.f32.partialorder %v790, 0.0
    %v803 = vand.u32 %v790, 2147483648
    %v804 = vsel %vm802, %v803, %v801
    %v805 = vmax.f32 %v747, 1e-05
    %v806 = vmax.f32 %v754, 1e-05
    %v807 = vrcp.pop %v805
    %v808 = vmul.f32 %v292, %v807
    %v809 = vrcp.pop %v806
    %v810 = vmul.f32 %v297, %v809
    %v811 = vmax.f32 %v769, 1e-05
    %v812 = vmax.f32 %v776, 1e-05
    %v813 = vrcp.pop %v811
    %v814 = vmul.f32 %v282, %v813
    %v815 = vrcp.pop %v812
    %v816 = vmul.f32 %v287, %v815
    %v817 = vmul.f32 %v808, %v814
    %v818 = vmul.f32 %v810, %v816
    %v819 = vsel %vm302, %v817, 0.0
    %820 = vadd.xlane.f32.xlu0 %v819
    %v821 = vpop.xlane.xlu0 %820
    %v822 = vsel %vm302, %v818, 0.0
    %823 = vadd.xlane.f32.xlu0 %v822
    %v824 = vpop.xlane.xlu0 %823
    %v825 = vsub.f32 1.0, %v821
    %v826 = vsub.f32 1.0, %v824
    %v827 = vsub.f32 0.0, %v825
    %v828 = vsub.f32 0.0, %v826
    %v829 = vrcp.pop 0.5
    %v830 = vmul.f32 %v827, %v829
    %v831 = vmul.f32 %v828, %v829
    %v832 = vmul.f32 %v830, 1.442695
    %v833 = vpow.pop %v832
    %v834 = vmul.f32 %v831, 1.442695
    %v835 = vpow.pop %v834
    loop: start=0, step=1, limit=50
    $region74: #{model_forward.1} parent=1 // loop_pre_header
      _
    $region75: #{model_forward.1} parent=1 // loop_header
      %s837 = sphi 0, %s841
      %p838 = scmp.ge.s32.totalorder %s837, 50
      %v842 = vphi 1.0, %v856
      %v843 = vphi 1.0, %v857
      %v844 = vphi 1.0, %v854
      %v845 = vphi 1.0, %v855
    $region76: #{model_forward.1} parent=1 // loop_header_branch
      %840 = sbr.rel (%p838) target = $region80
    $region77: #{model_forward.1} parent=1 // loop_body
      %v846 = vmul.f32 %v833, %v842
      %v847 = vmul.f32 %v835, %v843
      %v848 = vmul.f32 %v846, %v844
      %v849 = vmul.f32 %v847, %v845
      %v850 = vrcp.pop %v848
      %v851 = vrcp.pop %v849
      %v852 = vmul.f32 %v850, %v846
      %v853 = vmul.f32 %v851, %v847
      %v854 = vrcp.pop %v852
      %v855 = vrcp.pop %v853
      %v856 = vmul.f32 %v852, %v854
      %v857 = vmul.f32 %v853, %v855
    $region78: #{model_forward.1} parent=1 // loop_footer
      %s841 = sadd.s32 1, %s837
    $region79: #{model_forward.1} parent=1 // loop_footer_branch
      %836 = sbr.rel target = $region75
    $region80: #{model_forward.1} parent=1 // loop_exit
      _
    %v858 = vmul.f32 %v825, %v842
    %v859 = vmul.f32 %v826, %v843
    %v860 = vadd.f32 %v858, %v859
    %v861 = vrot.slane %v860, 4
    %v862 = vadd.f32 %v860, %v861
    %v863 = vrot.slane %v862, 2
    %v864 = vadd.f32 %v862, %v863
    %v865 = vrot.slane %v864, 1
    %v866 = vadd.f32 %v864, %v865
    %v867 = vmul.f32 %v866, 0.0625
    %vm868 = vcmask 0
    %869 = vst.msk [vmem:[#allocation4] sm:$0x1] %vm868, %v867
    %v870 = vmax.f32 %v747, 1e-12
    %v871 = vmax.f32 %v754, 1e-12
    %v872 = vrcp.pop %v870
    %v873 = vmul.f32 %v292, %v872
    %v874 = vrcp.pop %v871
    %v875 = vmul.f32 %v297, %v874
    %v876 = vmax.f32 %v769, 1e-12
    %v877 = vmax.f32 %v776, 1e-12
    %v878 = vrcp.pop %v876
    %v879 = vmul.f32 %v282, %v878
    %v880 = vrcp.pop %v877
    %v881 = vmul.f32 %v287, %v880
    %v882 = vmax.f32 %v797, 1e-12
    %v883 = vmax.f32 %v804, 1e-12
    %v884 = vrcp.pop %v882
    %v885 = vmul.f32 %v282, %v884
    %v886 = vrcp.pop %v883
    %v887 = vmul.f32 %v287, %v886
    %v888 = vmul.f32 %v873, %v879
    %v889 = vmul.f32 %v875, %v881
    %v890 = vsel %vm302, %v888, 0.0
    %891 = vadd.xlane.f32.xlu0 %v890
    %v892 = vpop.xlane.xlu0 %891
    %v893 = vsel %vm302, %v889, 0.0
    %894 = vadd.xlane.f32.xlu0 %v893
    %v895 = vpop.xlane.xlu0 %894
    %v896 = vmul.f32 %v873, %v873
    %v897 = vmul.f32 %v875, %v875
    %v898 = vsel %vm302, %v896, 0.0
    %899 = vadd.xlane.f32.xlu0 %v898
    %v900 = vpop.xlane.xlu0 %899
    %v901 = vsel %vm302, %v897, 0.0
    %902 = vadd.xlane.f32.xlu0 %v901
    %v903 = vpop.xlane.xlu0 %902
    %v904 = vrsqrt.pop %v900
    %v905 = vmul.f32 %v900, %v904
    %vm906 = vcmp.eq.f32.partialorder %v900, inf
    %v907 = vsel %vm906, %v900, %v905
    %vm908 = vcmp.eq.f32.partialorder %v900, 0.0
    %v909 = vand.u32 %v900, 2147483648
    %v910 = vsel %vm908, %v909, %v907
    %v911 = vrsqrt.pop %v903
    %v912 = vmul.f32 %v903, %v911
    %vm913 = vcmp.eq.f32.partialorder %v903, inf
    %v914 = vsel %vm913, %v903, %v912
    %vm915 = vcmp.eq.f32.partialorder %v903, 0.0
    %v916 = vand.u32 %v903, 2147483648
    %v917 = vsel %vm915, %v916, %v914
    %v918 = vmul.f32 %v879, %v879
    %v919 = vmul.f32 %v881, %v881
    %v920 = vsel %vm302, %v918, 0.0
    %921 = vadd.xlane.f32.xlu0 %v920
    %v922 = vpop.xlane.xlu0 %921
    %v923 = vsel %vm302, %v919, 0.0
    %924 = vadd.xlane.f32.xlu0 %v923
    %v925 = vpop.xlane.xlu0 %924
    %v926 = vrsqrt.pop %v922
    %v927 = vmul.f32 %v922, %v926
    %vm928 = vcmp.eq.f32.partialorder %v922, inf
    %v929 = vsel %vm928, %v922, %v927
    %vm930 = vcmp.eq.f32.partialorder %v922, 0.0
    %v931 = vand.u32 %v922, 2147483648
    %v932 = vsel %vm930, %v931, %v929
    %v933 = vrsqrt.pop %v925
    %v934 = vmul.f32 %v925, %v933
    %vm935 = vcmp.eq.f32.partialorder %v925, inf
    %v936 = vsel %vm935, %v925, %v934
    %vm937 = vcmp.eq.f32.partialorder %v925, 0.0
    %v938 = vand.u32 %v925, 2147483648
    %v939 = vsel %vm937, %v938, %v936
    %v940 = vmul.f32 %v910, %v932
    %v941 = vmul.f32 %v917, %v939
    %v942 = vmax.f32 %v940, 1e-08
    %v943 = vmax.f32 %v941, 1e-08
    %v944 = vrcp.pop %v942
    %v945 = vmul.f32 %v892, %v944
    %v946 = vrcp.pop %v943
    %v947 = vmul.f32 %v895, %v946
    %v948 = vmul.f32 %v945, 1.5
    %v949 = vmul.f32 %v947, 1.5
    %952 = vrot.lane.b32.xlu0 %v885, 112
    %v953 = vpop.permute.xlu0 %952
    %954 = vrot.lane.b32.xlu0 %v887, 112
    %v955 = vpop.permute.xlu0 %954
    %v958 = vmul.f32 %v873, %v953
    %v959 = vmul.f32 %v875, %v955
    %v960 = vsel %vm302, %v958, 0.0
    %961 = vadd.xlane.f32.xlu0 %v960
    %v962 = vpop.xlane.xlu0 %961
    %v963 = vsel %vm302, %v959, 0.0
    %964 = vadd.xlane.f32.xlu0 %v963
    %v965 = vpop.xlane.xlu0 %964
    %v966 = vmul.f32 %v885, %v885
    %v967 = vmul.f32 %v887, %v887
    %970 = vrot.lane.b32.xlu0 %v966, 112
    %v971 = vpop.permute.xlu0 %970
    %972 = vrot.lane.b32.xlu0 %v967, 112
    %v973 = vpop.permute.xlu0 %972
    %v976 = vsel %vm302, %v971, 0.0
    %977 = vadd.xlane.f32.xlu0 %v976
    %v978 = vpop.xlane.xlu0 %977
    %v979 = vsel %vm302, %v973, 0.0
    %980 = vadd.xlane.f32.xlu0 %v979
    %v981 = vpop.xlane.xlu0 %980
    %v982 = vrsqrt.pop %v978
    %v983 = vmul.f32 %v978, %v982
    %vm984 = vcmp.eq.f32.partialorder %v978, inf
    %v985 = vsel %vm984, %v978, %v983
    %vm986 = vcmp.eq.f32.partialorder %v978, 0.0
    %v987 = vand.u32 %v978, 2147483648
    %v988 = vsel %vm986, %v987, %v985
    %v989 = vrsqrt.pop %v981
    %v990 = vmul.f32 %v981, %v989
    %vm991 = vcmp.eq.f32.partialorder %v981, inf
    %v992 = vsel %vm991, %v981, %v990
    %vm993 = vcmp.eq.f32.partialorder %v981, 0.0
    %v994 = vand.u32 %v981, 2147483648
    %v995 = vsel %vm993, %v994, %v992
    %v996 = vmul.f32 %v910, %v988
    %v997 = vmul.f32 %v917, %v995
    %v998 = vmax.f32 %v996, 1e-08
    %v999 = vmax.f32 %v997, 1e-08
    %v1000 = vrcp.pop %v998
    %v1001 = vmul.f32 %v962, %v1000
    %v1002 = vrcp.pop %v999
    %v1003 = vmul.f32 %v965, %v1002
    %v1004 = vmul.f32 %v1001, 1.5
    %v1005 = vmul.f32 %v1003, 1.5
    %v1006 = vmax.f32 %v948, %v1004
    %v1007 = vmax.f32 %v949, %v1005
    %v1008 = vsub.f32 %v948, %v1006
    %v1009 = vsub.f32 %v949, %v1007
    %v1010 = vmul.f32 %v1008, 1.442695
    %v1011 = vpow.pop %v1010
    %v1012 = vmul.f32 %v1009, 1.442695
    %v1013 = vpow.pop %v1012
    %v1014 = vsub.f32 %v1004, %v1006
    %v1015 = vsub.f32 %v1005, %v1007
    %v1016 = vmul.f32 %v1014, 1.442695
    %v1017 = vpow.pop %v1016
    %v1018 = vmul.f32 %v1015, 1.442695
    %v1019 = vpow.pop %v1018
    %v1020 = vadd.f32 %v1011, %v1017
    %v1021 = vadd.f32 %v1013, %v1019
    %v1022 = vlog2.pop %v1020
    %v1023 = vmul.f32 %v1022, 0.6931472
    %v1024 = vlog2.pop %v1021
    %v1025 = vmul.f32 %v1024, 0.6931472
    %v1026 = vadd.f32 %v1006, %v1023
    %v1027 = vadd.f32 %v1007, %v1025
    %v1028 = vsub.f32 %v1026, %v948
    %v1029 = vsub.f32 %v1027, %v949
    %v1030 = vld [vmem:[%s1] sm:$0x1]
    %v1031 = vlaneseq
    %v1032 = vshrl.u32 %v1031, 7
    %v1033 = vlaneseq
    %v1034 = vshrl.u32 %v1033, 7
    %v1035 = vsub.s32 0, %v1034
    %v1036 = vrot.slane %v1030, %v1035
    %vm1037 = vcmp.eq.s32.totalorder %v1032, %v1036
    %v1038 = vsel %vm1037, 1, 0
    %v1039 = vcvt.s32.f32 %v1038
    %v1040 = vsel %vm302, %v1039, 0.0
    %1041 = vadd.xlane.f32.xlu0 %v1040
    %v1042 = vpop.xlane.xlu0 %1041
    %v1044 = vsel %vm302, %v1039, 0
    %1046 = vmatprep.subr.mxu0 0.0
    %1047 = vmatpush1.msra.mxu0 0.0
    %1048 = vmatprep.subr.mxu0 0.0
    %1049 = vmatpush1.msra.mxu0 0.0
    %1050 = vmatprep.subr.mxu0 0.0
    %1051 = vmatpush1.msra.mxu0 0.0
    %1052 = vmatprep.subr.mxu0 0.0
    %1053 = vmatpush1.msra.mxu0 0.0
    %1054 = vmatprep.subr.mxu0 0.0
    %1055 = vmatpush1.msra.mxu0 0.0
    %1056 = vmatprep.subr.mxu0 0.0
    %1057 = vmatpush1.msra.mxu0 0.0
    %1058 = vmatprep.subr.mxu0 0.0
    %1059 = vmatpush1.msra.mxu0 0.0
    %1060 = vmatprep.subr.mxu0 0.0
    %1061 = vmatpush1.msra.mxu0 0.0
    %1062 = vmatprep.subr.mxu0 0.0
    %1063 = vmatpush1.msra.mxu0 0.0
    %1064 = vmatprep.subr.mxu0 0.0
    %1065 = vmatpush1.msra.mxu0 0.0
    %1066 = vmatprep.subr.mxu0 0.0
    %1067 = vmatpush1.msra.mxu0 0.0
    %1068 = vmatprep.subr.mxu0 0.0
    %1069 = vmatpush1.msra.mxu0 0.0
    %1070 = vmatprep.subr.mxu0 0.0
    %1071 = vmatpush1.msra.mxu0 0.0
    %1072 = vmatprep.subr.mxu0 0.0
    %1073 = vmatpush1.msra.mxu0 0.0
    %1074 = vmatprep.subr.mxu0 0.0
    %1075 = vmatpush1.msra.mxu0 %v1029
    %1076 = vmatprep.subr.mxu0 0.0
    %1077 = vmatpush1.msra.mxu0 %v1028
    %1078 = vmatprep.subr.mxu0 0.0
    %1079 = vmatpush2.msra.mxu0 0.0
    %1080 = vmatprep.subr.mxu0 0.0
    %1081 = vmatpush2.msra.mxu0 0.0
    %1082 = vmatprep.subr.mxu0 0.0
    %1083 = vmatpush2.msra.mxu0 0.0
    %1084 = vmatprep.subr.mxu0 0.0
    %1085 = vmatpush2.msra.mxu0 0.0
    %1086 = vmatprep.subr.mxu0 0.0
    %1087 = vmatpush2.msra.mxu0 0.0
    %1088 = vmatprep.subr.mxu0 0.0
    %1089 = vmatpush2.msra.mxu0 0.0
    %1090 = vmatprep.subr.mxu0 0.0
    %1091 = vmatpush2.msra.mxu0 0.0
    %1092 = vmatprep.subr.mxu0 0.0
    %1093 = vmatpush2.msra.mxu0 0.0
    %1094 = vmatprep.subr.mxu0 0.0
    %1095 = vmatpush2.msra.mxu0 0.0
    %1096 = vmatprep.subr.mxu0 0.0
    %1097 = vmatpush2.msra.mxu0 0.0
    %1098 = vmatprep.subr.mxu0 0.0
    %1099 = vmatpush2.msra.mxu0 0.0
    %1100 = vmatprep.subr.mxu0 0.0
    %1101 = vmatpush2.msra.mxu0 0.0
    %1102 = vmatprep.subr.mxu0 0.0
    %1103 = vmatpush2.msra.mxu0 0.0
    %1104 = vmatprep.subr.mxu0 0.0
    %1105 = vmatpush2.msra.mxu0 0.0
    %1106 = vmatprep.subr.mxu0 0.0
    %1107 = vmatpush2.msra.mxu0 0.0
    %1108 = vmatprep.subr.mxu0 0.0
    %1109 = vmatpush2.msra.mxu0 0.0
    %1110 = vmatprep.mubr.f32.mxu0 0.0
    %1111 = vmatmul.mubr.f32.gmra.mxu0 %v1044
    %v1112 = vpop.f32.mrf.mxu0
    %v1113 = vadd.f32 0.0, %v1112
    %v1114 = vpop.f32.mrf.mxu0
    %1115 = vdwg.mxu0
    %vm1116 = vcmp.gt.f32.partialorder %v1042, 0.0
    %v1117 = vsel %vm1116, 1, 0
    %v1118 = vcvt.s32.f32 %v1117
    %v1119 = vmax.f32 %v1042, 1.0
    %v1120 = vrcp.pop %v1119
    %v1121 = vmul.f32 %v1113, %v1120
    %v1122 = vmul.f32 %v1121, %v1118
    %vm1123 = vcmask 7168
    %v1124 = vsel %vm1123, %v1122, 0.0
    %v1125 = vrot.slane %v1124, 4
    %v1126 = vadd.f32 %v1124, %v1125
    %v1127 = vrot.slane %v1126, 2
    %v1128 = vadd.f32 %v1126, %v1127
    %v1129 = vrot.slane %v1128, 1
    %v1130 = vadd.f32 %v1128, %v1129
    %v1131 = vrot.slane %v1118, 4
    %v1132 = vadd.f32 %v1118, %v1131
    %v1133 = vrot.slane %v1132, 2
    %v1134 = vadd.f32 %v1132, %v1133
    %v1135 = vrot.slane %v1134, 1
    %v1136 = vadd.f32 %v1134, %v1135
    %v1137 = vrcp.pop %v1136
    %v1138 = vmul.f32 %v1130, %v1137
    %1139 = vst.msk [vmem:[#allocation6] sm:$0x1] %vm868, %v1138
    // Predicated region
    $region81: #{model_forward.1} parent=1 // pred_check
      _
    $region82: #{model_forward.1} parent=1 // pred_check_branch
      %1141 = sbr.rel (0) target = $region84
    $region83: #{model_forward.1} parent=1 // pred_region
      _
    $region84: #{model_forward.1} parent=1 // pred_fallthru
      _
    // Predicated region
    $region85: #{model_forward.1} parent=1 // pred_check
      _
    $region86: #{model_forward.1} parent=1 // pred_check_branch
      %1143 = sbr.rel (0) target = $region88
    $region87: #{model_forward.1} parent=1 // pred_region
      %s1145 = ssub.s32 256, 256
      %1146 = vsyncadd [#allocation3], %s1145
      %s1147 = sshll.u32 [#allocation2], 4
      %s1148 = int_to_ptr.vmem [resolvable:$true] %s1147
      %1153 = dma.vmem_to_hbm [thread:$0]  %s1148, 256, %s19, [#allocation3], 128, 128, 8
    $region88: #{model_forward.1} parent=1 // pred_fallthru
      _
    // Predicated region
    $region89: #{model_forward.1} parent=1 // pred_check
      _
    $region90: #{model_forward.1} parent=1 // pred_check_branch
      %1155 = sbr.rel (0) target = $region92
    $region91: #{model_forward.1} parent=1 // pred_region
      _
    $region92: #{model_forward.1} parent=1 // pred_fallthru
      _
    // Predicated region
    $region93: #{model_forward.1} parent=1 // pred_check
      _
    $region94: #{model_forward.1} parent=1 // pred_check_branch
      %1157 = sbr.rel (0) target = $region96
    $region95: #{model_forward.1} parent=1 // pred_region
      _
    $region96: #{model_forward.1} parent=1 // pred_fallthru
      _
    // Predicated region
    $region97: #{model_forward.1} parent=1 // pred_check
      _
    $region98: #{model_forward.1} parent=1 // pred_check_branch
      %1159 = sbr.rel (0) target = $region100
    $region99: #{model_forward.1} parent=1 // pred_region
      %s1161 = ssub.s32 16, 16
      %1162 = vsyncadd [#allocation5], %s1161
      %s1164 = sshll.u32 [#allocation4], 4
      %s1165 = int_to_ptr.vmem [resolvable:$true] %s1164
      %1167 = dma.vmem_to_hbm [thread:$0]  %s1165, 16, %s22, [#allocation5]
    $region100: #{model_forward.1} parent=1 // pred_fallthru
      _
    // Predicated region
    $region101: #{model_forward.1} parent=1 // pred_check
      _
    $region102: #{model_forward.1} parent=1 // pred_check_branch
      %1169 = sbr.rel (0) target = $region104
    $region103: #{model_forward.1} parent=1 // pred_region
      %s1171 = ssub.s32 16, 16
      %1172 = vsyncadd [#allocation5], %s1171
      %s1174 = sshll.u32 [#allocation6], 4
      %s1175 = int_to_ptr.vmem [resolvable:$true] %s1174
      %1177 = dma.vmem_to_hbm [thread:$0]  %s1175, 16, %s23, [#allocation5]
    $region104: #{model_forward.1} parent=1 // pred_fallthru
      _
    // Predicated region
    $region105: #{model_forward.1} parent=1 // pred_check
      _
    $region106: #{model_forward.1} parent=1 // pred_check_branch
      %1179 = sbr.rel (0) target = $region108
    $region107: #{model_forward.1} parent=1 // pred_region
      _
    $region108: #{model_forward.1} parent=1 // pred_fallthru
      _
    // Predicated region
    $region109: #{model_forward.1} parent=1 // pred_check
      _
    $region110: #{model_forward.1} parent=1 // pred_check_branch
      %1181 = sbr.rel (0) target = $region112
    $region111: #{model_forward.1} parent=1 // pred_region
      %1182 = dma.done [#allocation3], 256
    $region112: #{model_forward.1} parent=1 // pred_fallthru
      _
    // Predicated region
    $region113: #{model_forward.1} parent=1 // pred_check
      _
    $region114: #{model_forward.1} parent=1 // pred_check_branch
      %1184 = sbr.rel (0) target = $region116
    $region115: #{model_forward.1} parent=1 // pred_region
      _
    $region116: #{model_forward.1} parent=1 // pred_fallthru
      _
    // Predicated region
    $region117: #{model_forward.1} parent=1 // pred_check
      _
    $region118: #{model_forward.1} parent=1 // pred_check_branch
      %1186 = sbr.rel (0) target = $region120
    $region119: #{model_forward.1} parent=1 // pred_region
      _
    $region120: #{model_forward.1} parent=1 // pred_fallthru
      _
    // Predicated region
    $region121: #{model_forward.1} parent=1 // pred_check
      _
    $region122: #{model_forward.1} parent=1 // pred_check_branch
      %1188 = sbr.rel (0) target = $region124
    $region123: #{model_forward.1} parent=1 // pred_region
      %1189 = dma.done [#allocation5], 16
    $region124: #{model_forward.1} parent=1 // pred_fallthru
      _
    // Predicated region
    $region125: #{model_forward.1} parent=1 // pred_check
      _
    $region126: #{model_forward.1} parent=1 // pred_check_branch
      %1191 = sbr.rel (0) target = $region128
    $region127: #{model_forward.1} parent=1 // pred_region
      %1192 = dma.done [#allocation5], 16
    $region128: #{model_forward.1} parent=1 // pred_fallthru
      _
    %1193 = vsyncpa [#allocation3], 1
    %1194 = vsyncpa [#allocation5], 1

</llo_original>
